<compile_context>
chip_gen: v5e
topology: v5e:2x2
jax: 0.10.0
libtpu: 0.0.40
codegen_flags: <defaults>
</compile_context>

<pallas_src>
import math

import jax
import jax.numpy as jnp
import numpy as np
from jax import lax
from jax.experimental import pallas as pl
from jax.experimental.pallas import tpu as pltpu

_HI = jax.lax.Precision.HIGHEST


def _silu(x):
    return x * jax.nn.sigmoid(x)


def cms6_kernel(m1_ref, x_ref, z_ref,
                cxw_ref, cxb_ref, cyw_ref, cyb_ref,
                wall_ref, wdelta_ref, dtb_ref, at_ref, dvec_ref,
                out_ref,
                h_ref, xpad_ref, ypad_ref, delta_s, u_s, bv_s, cv_s):
    c = pl.program_id(1)                      # chunk index along L (sequential)
    TL, d = m1_ref.shape
    dconv = cxw_ref.shape[0]
    pad = dconv - 1
    N = at_ref.shape[0]
    r = wdelta_ref.shape[0]
    OFF = xpad_ref.shape[0] - TL              # sublane-aligned staging offset (>= pad)
    Tb = math.gcd(TL, 8)                      # sub-block length for the scan
    nb = TL // Tb
    DT = d if d <= 512 else 512               # channel tile for the recurrence

    # ---- per-sequence init: SSM state + conv tails -------------------------
    @pl.when(c == 0)
    def _init():
        h_ref[...] = jnp.zeros_like(h_ref)
        if pad > 0:
            xpad_ref[OFF - pad:OFF, :] = jnp.zeros((pad, d), jnp.float32)
            ypad_ref[OFF - pad:OFF, :] = jnp.zeros((pad, d), jnp.float32)

    # stage the current chunk at a sublane-aligned row (plain, unmasked store)
    xpad_ref[OFF:, :] = x_ref[...].astype(jnp.float32)
    ypad_ref[OFF:, :] = m1_ref[...].astype(jnp.float32)

    def causal_dwconv(p_ref, w_ref, b_ref):
        # out[t, ch] = b[ch] + sum_k w[k, ch] * x[t - (dconv-1-k), ch]
        acc = jnp.zeros((TL, d), jnp.float32)
        for k in range(dconv):                # dconv taps, static & tiny
            base = OFF - pad + k
            acc = acc + p_ref[base:base + TL, :] * w_ref[k:k + 1, :]
        return acc + b_ref[...]

    x_c = _silu(causal_dwconv(xpad_ref, cxw_ref, cxb_ref))    # (TL, d) selection
    u = _silu(causal_dwconv(ypad_ref, cyw_ref, cyb_ref))      # (TL, d) scan input

    # carry the last (dconv-1) raw timesteps of this chunk to the next chunk
    if pad > 0:
        xpad_ref[OFF - pad:OFF, :] = xpad_ref[OFF + TL - pad:OFF + TL, :]
        ypad_ref[OFF - pad:OFF, :] = ypad_ref[OFF + TL - pad:OFF + TL, :]

    # ---- fused dt/B/C projection (single MXU matmul, once per chunk) -------
    proj = jnp.dot(x_c, wall_ref[...], preferred_element_type=jnp.float32,
                   precision=_HI)             # off the serial path; keep exact
    dt_lr = proj[:, :r]                                       # (TL, r)
    bv_s[...] = proj[:, r:r + N]                              # (TL, N)
    cv_s[...] = proj[:, r + N:r + 2 * N]                      # (TL, N)

    if r <= 8:
        # low-rank expansion on the VPU (exact f32); dt_rank is typically 1
        delta_raw = jnp.zeros((TL, d), jnp.float32)
        for j in range(r):
            delta_raw = delta_raw + dt_lr[:, j:j + 1] * wdelta_ref[j:j + 1, :]
    else:
        delta_raw = jnp.dot(dt_lr, wdelta_ref[...],
                            preferred_element_type=jnp.float32)
    delta_s[...] = jax.nn.softplus(delta_raw + dtb_ref[...])  # (TL, d)
    u_s[...] = u

    # ---- selective scan: d-tiled, sub-block-hoisted exp / B,C columns ------
    # state layout (N, d): d on lanes (lane-dense FMA chain), N on sublanes.
    for d0 in range(0, d, DT):
        dl = min(DT, d - d0)
        a_tile = at_ref[:, d0:d0 + dl]                        # (N, dl), A = -exp(A_log)
        d_tile = dvec_ref[:, d0:d0 + dl]                      # (1, dl)

        def blk_body(bi, h, a_tile=a_tile, d_tile=d_tile, d0=d0, dl=dl):
            t0 = pl.multiple_of(bi * Tb, Tb)
            delta_blk = delta_s[pl.ds(t0, Tb), d0:d0 + dl]    # (Tb, dl)
            u_blk = u_s[pl.ds(t0, Tb), d0:d0 + dl]            # (Tb, dl)
            du_blk = delta_blk * u_blk                        # (Tb, dl)
            # one small transpose per sub-block: B/C as (N, Tb) columns, so the
            # per-step broadcast keeps h lane-dense with no per-step relayout.
            bT = bv_s[pl.ds(t0, Tb), :].T                     # (N, Tb)
            cT = cv_s[pl.ds(t0, Tb), :].T                     # (N, Tb)
            # batched exp: EUP work hoisted off the serial h dependency chain
            dA_blk = jnp.exp(delta_blk[:, None, :] * a_tile[None, :, :])  # (Tb,N,dl)

            ys = []
            for j in range(Tb):                               # pure FMA chain
                h = dA_blk[j] * h + bT[:, j:j + 1] * du_blk[j:j + 1, :]
                ys.append(jnp.sum(cT[:, j:j + 1] * h, axis=0, keepdims=True))
            y_blk = jnp.concatenate(ys, axis=0)               # (Tb, dl)

            # fused epilogue + one aligned (Tb, dl) store per sub-block
            z_blk = z_ref[pl.ds(t0, Tb), d0:d0 + dl].astype(jnp.float32)
            y_out = (y_blk + u_blk * d_tile) * _silu(z_blk)
            out_ref[pl.ds(t0, Tb), d0:d0 + dl] = y_out.astype(out_ref.dtype)
            return h

        h_fin = lax.fori_loop(0, nb, blk_body, h_ref[:, d0:d0 + dl])
        h_ref[:, d0:d0 + dl] = h_fin


def _pick_chunk(L, d, requested):
    """Sequence-chunk length: multiple of 8 dividing L, bounded by a d-aware cap."""
    if requested is not None:
        tl = int(requested)
        if L % tl == 0 and (tl % 8 == 0 or tl == L):
            return tl
    cap = 512 if d <= 1024 else (256 if d <= 2048 else 128)   # v6e can go larger
    if L <= cap:
        return L
    start = cap - cap % 8
    for tl in range(start, 7, -8):
        if L % tl == 0:
            return tl
    # TODO(synk): L has no multiple-of-8 divisor <= cap; pad L in the caller
    # instead of blowing VMEM with TL = L.
    return L


def cms6_forward(m1, m2, params, *, chunk_len=None):
    """m1: (B, L, d_model), m2: (B, L, 2*d_model) -> (B, L, d_model)."""
    B, L, d = m1.shape
    N = params["A_log"].shape[1]
    r = params["dt_proj_w"].shape[1]
    dconv = params["conv_x_w"].shape[1]
    pad = dconv - 1

    TL = _pick_chunk(L, d, chunk_len)
    n_chunks = L // TL
    OFF = max(8, ((pad + 7) // 8) * 8)        # aligned staging row for pad buffers

    # glue: split modality2, reshape/transpose parameters for the (L, d) layout
    m2x = m2[..., :d]
    m2z = m2[..., d:]
    cxw = params["conv_x_w"].T                 # (dconv, d)
    cyw = params["conv_y_w"].T                 # (dconv, d)
    cxb = params["conv_x_b"].reshape(1, d)
    cyb = params["conv_y_b"].reshape(1, d)
    wall = params["x_proj_w"].T                # (d, r + 2N): [dt | B | C] fused
    wdelta = params["dt_proj_w"].T             # (r, d)
    dtb = params["dt_bias"].reshape(1, d)
    a_t = (-jnp.exp(params["A_log"])).T        # (N, d)
    dvec = params["D"].reshape(1, d)

    def _full(shape):
        nd = len(shape)
        return pl.BlockSpec(shape, lambda b, c, nd=nd: (0,) * nd)

    per_batch = pl.BlockSpec((None, TL, d), lambda b, c: (b, c, 0))

    # VMEM budget derived from actual buffers (double-buffered I/O + scratch +
    # weights) with headroom, capped at 48 MiB for v7x's 64 MiB physical VMEM.
    f32 = 4
    vmem_est = (2 * 4 * TL * d
                + N * d + 2 * (TL + OFF) * d + 2 * TL * d + 2 * TL * N
                + 2 * dconv * d + 4 * d + d * (r + 2 * N) + r * d + N * d) * f32
    vmem_limit = int(min(max(vmem_est + (8 << 20), 16 << 20), 48 << 20))

    return pl.pallas_call(
        cms6_kernel,
        out_shape=jax.ShapeDtypeStruct((B, L, d), jnp.float32),
        grid_spec=pltpu.PrefetchScalarGridSpec(
            num_scalar_prefetch=0,
            grid=(B, n_chunks),
            in_specs=[
                per_batch,                            # modality1
                per_batch,                            # modality2 x-half
                per_batch,                            # modality2 z-half (gate)
                _full((dconv, d)), _full((1, d)),     # conv1d_x  (w, b)
                _full((dconv, d)), _full((1, d)),     # conv1d_y  (w, b)
                _full((d, r + 2 * N)),                # fused x_proj weight
                _full((r, d)), _full((1, d)),         # dt_proj weight (T), bias
                _full((N, d)), _full((1, d)),         # A^T, D
            ],
            out_specs=per_batch,
            scratch_shapes=[
                pltpu.VMEM((N, d), jnp.float32),                 # h state (carried)
                pltpu.VMEM((TL + OFF, d), jnp.float32),          # conv pad buf (x)
                pltpu.VMEM((TL + OFF, d), jnp.float32),          # conv pad buf (m1)
                pltpu.VMEM((TL, d), jnp.float32),                # delta
                pltpu.VMEM((TL, d), jnp.float32),                # u
                pltpu.VMEM((TL, N), jnp.float32),                # B_t rows
                pltpu.VMEM((TL, N), jnp.float32),                # C_t rows
            ],
        ),
        compiler_params=pltpu.CompilerParams(
            dimension_semantics=("parallel", "arbitrary"),
            vmem_limit_bytes=vmem_limit,
        ),
    )(m1, m2x, m2z, cxw, cxb, cyw, cyb, wall, wdelta, dtb, a_t, dvec)


def reference_forward(m1, m2, params):
    """Pure-JAX reference with identical semantics (state kept O(d*N))."""
    B, L, d = m1.shape
    N = params["A_log"].shape[1]
    r = params["dt_proj_w"].shape[1]
    dconv = params["conv_x_w"].shape[1]
    silu = lambda v: v * jax.nn.sigmoid(v)

    def dwconv(x, w, b):  # x (B, L, d), w (d, dconv), b (d,)
        xp = jnp.pad(x, ((0, 0), (dconv - 1, 0), (0, 0)))
        out = sum(xp[:, k:k + L, :] * w[:, k][None, None, :] for k in range(dconv))
        return out + b[None, None, :]

    x_in, z = m2[..., :d], m2[..., d:]
    x_c = silu(dwconv(x_in, params["conv_x_w"], params["conv_x_b"]))
    u = silu(dwconv(m1, params["conv_y_w"], params["conv_y_b"]))
    x_dbl = jnp.einsum("bld,ed->ble", x_c, params["x_proj_w"], precision=_HI)
    dt_lr = x_dbl[..., :r]
    Bv = x_dbl[..., r:r + N]
    Cv = x_dbl[..., r + N:]
    delta_raw = jnp.einsum("blr,dr->bld", dt_lr, params["dt_proj_w"], precision=_HI)
    delta = jax.nn.softplus(delta_raw + params["dt_bias"][None, None, :])
    A = -jnp.exp(params["A_log"])                                 # (d, N)
    h = jnp.zeros((B, d, N), jnp.float32)
    ys = []
    for t in range(L):
        dA = jnp.exp(delta[:, t, :, None] * A[None])              # (B, d, N)
        dBu = (delta[:, t] * u[:, t])[..., None] * Bv[:, t, None, :]
        h = dA * h + dBu
        ys.append(jnp.sum(h * Cv[:, t, None, :], axis=-1))
    y = jnp.stack(ys, axis=1)                                     # (B, L, d)
    y = y + u * params["D"][None, None, :]
    return y * silu(z)


if __name__ == "__main__":
    B, L = 2, 16
    d_model, d_state, d_conv, dt_rank = 32, 16, 4, 1
    dt_min, dt_max, dt_init_floor = 1e-3, 1e-1, 1e-4

    key = jax.random.PRNGKey(0)
    ks = jax.random.split(key, 10)

    conv_bound = 1.0 / math.sqrt(d_conv)
    lin_bound = 1.0 / math.sqrt(d_model)
    dt_init_std = dt_rank ** -0.5

    params = {
        "conv_x_w": jax.random.uniform(ks[0], (d_model, d_conv),
                                       minval=-conv_bound, maxval=conv_bound),
        "conv_x_b": jax.random.uniform(ks[1], (d_model,),
                                       minval=-conv_bound, maxval=conv_bound),
        "conv_y_w": jax.random.uniform(ks[2], (d_model, d_conv),
                                       minval=-conv_bound, maxval=conv_bound),
        "conv_y_b": jax.random.uniform(ks[3], (d_model,),
                                       minval=-conv_bound, maxval=conv_bound),
        "x_proj_w": jax.random.uniform(ks[4], (dt_rank + 2 * d_state, d_model),
                                       minval=-lin_bound, maxval=lin_bound),
        "dt_proj_w": jax.random.uniform(ks[5], (d_model, dt_rank),
                                        minval=-dt_init_std, maxval=dt_init_std),
    }
    dt = jnp.exp(jax.random.uniform(ks[6], (d_model,))
                 * (math.log(dt_max) - math.log(dt_min)) + math.log(dt_min))
    dt = jnp.clip(dt, dt_init_floor)
    params["dt_bias"] = dt + jnp.log(-jnp.expm1(-dt))          # inverse softplus
    params["A_log"] = jnp.log(jnp.broadcast_to(
        jnp.arange(1, d_state + 1, dtype=jnp.float32), (d_model, d_state)))
    params["D"] = jnp.ones((d_model,), jnp.float32)

    modality1 = jax.random.normal(ks[7], (B, L, d_model), jnp.float32)
    modality2 = jax.random.normal(ks[8], (B, L, 2 * d_model), jnp.float32)

    # chunk_len=8 -> two sequence chunks: exercises the carried SSM state and
    # the carried depthwise-conv tails across chunk boundaries.
    out = cms6_forward(modality1, modality2, params, chunk_len=8)
    out = jax.block_until_ready(out)

    ref = reference_forward(modality1, modality2, params)
    np.testing.assert_allclose(np.asarray(out), np.asarray(ref), rtol=2e-3, atol=2e-3)
    assert out.shape == (B, L, d_model)
    print("KERNEL_OK")
</pallas_src>

<mosaic_0001>
module attributes {stable_mosaic.version = 11 : i64} {
  func.func @cms6_kernel(%arg0: i32, %arg1: i32, %arg2: memref<1x8x32xf32, #tpu.memory_space<vmem>>, %arg3: memref<1x8x32xf32, #tpu.memory_space<vmem>>, %arg4: memref<1x8x32xf32, #tpu.memory_space<vmem>>, %arg5: memref<4x32xf32, #tpu.memory_space<vmem>>, %arg6: memref<1x32xf32, #tpu.memory_space<vmem>>, %arg7: memref<4x32xf32, #tpu.memory_space<vmem>>, %arg8: memref<1x32xf32, #tpu.memory_space<vmem>>, %arg9: memref<32x33xf32, #tpu.memory_space<vmem>>, %arg10: memref<1x32xf32, #tpu.memory_space<vmem>>, %arg11: memref<1x32xf32, #tpu.memory_space<vmem>>, %arg12: memref<16x32xf32, #tpu.memory_space<vmem>>, %arg13: memref<1x32xf32, #tpu.memory_space<vmem>>, %arg14: memref<1x8x32xf32, #tpu.memory_space<vmem>>, %arg15: memref<16x32xf32, #tpu.memory_space<vmem>>, %arg16: memref<16x32xf32, #tpu.memory_space<vmem>>, %arg17: memref<16x32xf32, #tpu.memory_space<vmem>>, %arg18: memref<8x32xf32, #tpu.memory_space<vmem>>, %arg19: memref<8x32xf32, #tpu.memory_space<vmem>>, %arg20: memref<8x16xf32, #tpu.memory_space<vmem>>, %arg21: memref<8x16xf32, #tpu.memory_space<vmem>>) attributes {dimension_semantics = [#tpu.dimension_semantics<parallel>, #tpu.dimension_semantics<arbitrary>], iteration_bounds = array<i64: 2, 2>, scalar_prefetch = 0 : i64, scratch_operands = 7 : i64, tpu.core_type = #tpu.core_type<tc>, window_params = [{transform_indices = @transform_0, window_bounds = array<i64: 1, 8, 32>}, {transform_indices = @transform_1, window_bounds = array<i64: 1, 8, 32>}, {transform_indices = @transform_2, window_bounds = array<i64: 1, 8, 32>}, {pipeline_mode = #tpu.pipeline_mode<synchronous>, transform_indices = @transform_3, window_bounds = array<i64: 4, 32>}, {pipeline_mode = #tpu.pipeline_mode<synchronous>, transform_indices = @transform_4, window_bounds = array<i64: 1, 32>}, {pipeline_mode = #tpu.pipeline_mode<synchronous>, transform_indices = @transform_5, window_bounds = array<i64: 4, 32>}, {pipeline_mode = #tpu.pipeline_mode<synchronous>, transform_indices = @transform_6, window_bounds = array<i64: 1, 32>}, {pipeline_mode = #tpu.pipeline_mode<synchronous>, transform_indices = @transform_7, window_bounds = array<i64: 32, 33>}, {pipeline_mode = #tpu.pipeline_mode<synchronous>, transform_indices = @transform_8, window_bounds = array<i64: 1, 32>}, {pipeline_mode = #tpu.pipeline_mode<synchronous>, transform_indices = @transform_9, window_bounds = array<i64: 1, 32>}, {pipeline_mode = #tpu.pipeline_mode<synchronous>, transform_indices = @transform_10, window_bounds = array<i64: 16, 32>}, {pipeline_mode = #tpu.pipeline_mode<synchronous>, transform_indices = @transform_11, window_bounds = array<i64: 1, 32>}, {transform_indices = @transform_12, window_bounds = array<i64: 1, 8, 32>}]} {
    %c0_i32 = arith.constant 0 : i32
    %0 = arith.cmpi eq, %arg1, %c0_i32 : i32
    %1 = arith.extui %0 : i1 to i32
    %c0_i32_0 = arith.constant 0 : i32
    %2 = arith.cmpi ne, %1, %c0_i32_0 : i32
    scf.if %2 {
      %cst_93 = arith.constant 0.000000e+00 : f32
      %258 = vector.broadcast %cst_93 : f32 to vector<16x32xf32>
      %c0_94 = arith.constant 0 : index
      %c0_95 = arith.constant 0 : index
      %259 = vector.load %arg15[%c0_94, %c0_95] : memref<16x32xf32, #tpu.memory_space<vmem>>, vector<16x32xf32>
      tpu.vector_store %arg15[%c0_94, %c0_95], %258 {strides = array<i32>} : memref<16x32xf32, #tpu.memory_space<vmem>>, vector<16x32xf32>,
      %cst_96 = arith.constant 0.000000e+00 : f32
      %260 = vector.broadcast %cst_96 : f32 to vector<3x32xf32>
      %c5_97 = arith.constant 5 : index
      %c0_98 = arith.constant 0 : index
      %261 = vector.load %arg16[%c5_97, %c0_98] : memref<16x32xf32, #tpu.memory_space<vmem>>, vector<3x32xf32>
      tpu.vector_store %arg16[%c5_97, %c0_98], %260 {strides = array<i32>} : memref<16x32xf32, #tpu.memory_space<vmem>>, vector<3x32xf32>,
      %cst_99 = arith.constant 0.000000e+00 : f32
      %262 = vector.broadcast %cst_99 : f32 to vector<3x32xf32>
      %c5_100 = arith.constant 5 : index
      %c0_101 = arith.constant 0 : index
      %263 = vector.load %arg17[%c5_100, %c0_101] : memref<16x32xf32, #tpu.memory_space<vmem>>, vector<3x32xf32>
      tpu.vector_store %arg17[%c5_100, %c0_101], %262 {strides = array<i32>} : memref<16x32xf32, #tpu.memory_space<vmem>>, vector<3x32xf32>,
    } else {
    }
    %c0 = arith.constant 0 : index
    %c0_1 = arith.constant 0 : index
    %c0_2 = arith.constant 0 : index
    %3 = vector.load %arg3[%c0, %c0_1, %c0_2] : memref<1x8x32xf32, #tpu.memory_space<vmem>>, vector<1x8x32xf32>
    %4 = vector.shape_cast %3 : vector<1x8x32xf32> to vector<8x32xf32>
    %c8 = arith.constant 8 : index
    %c0_3 = arith.constant 0 : index
    %5 = vector.load %arg16[%c8, %c0_3] : memref<16x32xf32, #tpu.memory_space<vmem>>, vector<8x32xf32>
    tpu.vector_store %arg16[%c8, %c0_3], %4 {strides = array<i32>} : memref<16x32xf32, #tpu.memory_space<vmem>>, vector<8x32xf32>,
    %c0_4 = arith.constant 0 : index
    %c0_5 = arith.constant 0 : index
    %c0_6 = arith.constant 0 : index
    %6 = vector.load %arg2[%c0_4, %c0_5, %c0_6] : memref<1x8x32xf32, #tpu.memory_space<vmem>>, vector<1x8x32xf32>
    %7 = vector.shape_cast %6 : vector<1x8x32xf32> to vector<8x32xf32>
    %c8_7 = arith.constant 8 : index
    %c0_8 = arith.constant 0 : index
    %8 = vector.load %arg17[%c8_7, %c0_8] : memref<16x32xf32, #tpu.memory_space<vmem>>, vector<8x32xf32>
    tpu.vector_store %arg17[%c8_7, %c0_8], %7 {strides = array<i32>} : memref<16x32xf32, #tpu.memory_space<vmem>>, vector<8x32xf32>,
    %cst = arith.constant 0.000000e+00 : f32
    %9 = vector.broadcast %cst : f32 to vector<8x32xf32>
    %c5 = arith.constant 5 : index
    %c0_9 = arith.constant 0 : index
    %10 = vector.load %arg16[%c5, %c0_9] : memref<16x32xf32, #tpu.memory_space<vmem>>, vector<8x32xf32>
    %c0_10 = arith.constant 0 : index
    %c0_11 = arith.constant 0 : index
    %11 = vector.load %arg5[%c0_10, %c0_11] : memref<4x32xf32, #tpu.memory_space<vmem>>, vector<1x32xf32>
    %12 = vector.broadcast %11 : vector<1x32xf32> to vector<8x32xf32>
    %13 = arith.mulf %10, %12 : vector<8x32xf32>
    %14 = arith.addf %9, %13 : vector<8x32xf32>
    %c6 = arith.constant 6 : index
    %c0_12 = arith.constant 0 : index
    %15 = vector.load %arg16[%c6, %c0_12] : memref<16x32xf32, #tpu.memory_space<vmem>>, vector<8x32xf32>
    %c1 = arith.constant 1 : index
    %c0_13 = arith.constant 0 : index
    %16 = vector.load %arg5[%c1, %c0_13] : memref<4x32xf32, #tpu.memory_space<vmem>>, vector<1x32xf32>
    %17 = vector.broadcast %16 : vector<1x32xf32> to vector<8x32xf32>
    %18 = arith.mulf %15, %17 : vector<8x32xf32>
    %19 = arith.addf %14, %18 : vector<8x32xf32>
    %c7 = arith.constant 7 : index
    %c0_14 = arith.constant 0 : index
    %20 = vector.load %arg16[%c7, %c0_14] : memref<16x32xf32, #tpu.memory_space<vmem>>, vector<8x32xf32>
    %c2 = arith.constant 2 : index
    %c0_15 = arith.constant 0 : index
    %21 = vector.load %arg5[%c2, %c0_15] : memref<4x32xf32, #tpu.memory_space<vmem>>, vector<1x32xf32>
    %22 = vector.broadcast %21 : vector<1x32xf32> to vector<8x32xf32>
    %23 = arith.mulf %20, %22 : vector<8x32xf32>
    %24 = arith.addf %19, %23 : vector<8x32xf32>
    %c8_16 = arith.constant 8 : index
    %c0_17 = arith.constant 0 : index
    %25 = vector.load %arg16[%c8_16, %c0_17] : memref<16x32xf32, #tpu.memory_space<vmem>>, vector<8x32xf32>
    %c3 = arith.constant 3 : index
    %c0_18 = arith.constant 0 : index
    %26 = vector.load %arg5[%c3, %c0_18] : memref<4x32xf32, #tpu.memory_space<vmem>>, vector<1x32xf32>
    %27 = vector.broadcast %26 : vector<1x32xf32> to vector<8x32xf32>
    %28 = arith.mulf %25, %27 : vector<8x32xf32>
    %29 = arith.addf %24, %28 : vector<8x32xf32>
    %c0_19 = arith.constant 0 : index
    %c0_20 = arith.constant 0 : index
    %30 = vector.load %arg6[%c0_19, %c0_20] : memref<1x32xf32, #tpu.memory_space<vmem>>, vector<1x32xf32>
    %31 = vector.broadcast %30 : vector<1x32xf32> to vector<8x32xf32>
    %32 = arith.addf %29, %31 : vector<8x32xf32>
    %33 = arith.negf %32 : vector<8x32xf32>
    %34 = math.exp %33 : vector<8x32xf32>
    %cst_21 = arith.constant 1.000000e+00 : f32
    %35 = vector.broadcast %cst_21 : f32 to vector<8x32xf32>
    %36 = arith.addf %35, %34 : vector<8x32xf32>
    %37 = arith.divf %35, %36 : vector<8x32xf32>
    %38 = arith.mulf %32, %37 : vector<8x32xf32>
    %cst_22 = arith.constant 0.000000e+00 : f32
    %39 = vector.broadcast %cst_22 : f32 to vector<8x32xf32>
    %c5_23 = arith.constant 5 : index
    %c0_24 = arith.constant 0 : index
    %40 = vector.load %arg17[%c5_23, %c0_24] : memref<16x32xf32, #tpu.memory_space<vmem>>, vector<8x32xf32>
    %c0_25 = arith.constant 0 : index
    %c0_26 = arith.constant 0 : index
    %41 = vector.load %arg7[%c0_25, %c0_26] : memref<4x32xf32, #tpu.memory_space<vmem>>, vector<1x32xf32>
    %42 = vector.broadcast %41 : vector<1x32xf32> to vector<8x32xf32>
    %43 = arith.mulf %40, %42 : vector<8x32xf32>
    %44 = arith.addf %39, %43 : vector<8x32xf32>
    %c6_27 = arith.constant 6 : index
    %c0_28 = arith.constant 0 : index
    %45 = vector.load %arg17[%c6_27, %c0_28] : memref<16x32xf32, #tpu.memory_space<vmem>>, vector<8x32xf32>
    %c1_29 = arith.constant 1 : index
    %c0_30 = arith.constant 0 : index
    %46 = vector.load %arg7[%c1_29, %c0_30] : memref<4x32xf32, #tpu.memory_space<vmem>>, vector<1x32xf32>
    %47 = vector.broadcast %46 : vector<1x32xf32> to vector<8x32xf32>
    %48 = arith.mulf %45, %47 : vector<8x32xf32>
    %49 = arith.addf %44, %48 : vector<8x32xf32>
    %c7_31 = arith.constant 7 : index
    %c0_32 = arith.constant 0 : index
    %50 = vector.load %arg17[%c7_31, %c0_32] : memref<16x32xf32, #tpu.memory_space<vmem>>, vector<8x32xf32>
    %c2_33 = arith.constant 2 : index
    %c0_34 = arith.constant 0 : index
    %51 = vector.load %arg7[%c2_33, %c0_34] : memref<4x32xf32, #tpu.memory_space<vmem>>, vector<1x32xf32>
    %52 = vector.broadcast %51 : vector<1x32xf32> to vector<8x32xf32>
    %53 = arith.mulf %50, %52 : vector<8x32xf32>
    %54 = arith.addf %49, %53 : vector<8x32xf32>
    %c8_35 = arith.constant 8 : index
    %c0_36 = arith.constant 0 : index
    %55 = vector.load %arg17[%c8_35, %c0_36] : memref<16x32xf32, #tpu.memory_space<vmem>>, vector<8x32xf32>
    %c3_37 = arith.constant 3 : index
    %c0_38 = arith.constant 0 : index
    %56 = vector.load %arg7[%c3_37, %c0_38] : memref<4x32xf32, #tpu.memory_space<vmem>>, vector<1x32xf32>
    %57 = vector.broadcast %56 : vector<1x32xf32> to vector<8x32xf32>
    %58 = arith.mulf %55, %57 : vector<8x32xf32>
    %59 = arith.addf %54, %58 : vector<8x32xf32>
    %c0_39 = arith.constant 0 : index
    %c0_40 = arith.constant 0 : index
    %60 = vector.load %arg8[%c0_39, %c0_40] : memref<1x32xf32, #tpu.memory_space<vmem>>, vector<1x32xf32>
    %61 = vector.broadcast %60 : vector<1x32xf32> to vector<8x32xf32>
    %62 = arith.addf %59, %61 : vector<8x32xf32>
    %63 = arith.negf %62 : vector<8x32xf32>
    %64 = math.exp %63 : vector<8x32xf32>
    %cst_41 = arith.constant 1.000000e+00 : f32
    %65 = vector.broadcast %cst_41 : f32 to vector<8x32xf32>
    %66 = arith.addf %65, %64 : vector<8x32xf32>
    %67 = arith.divf %65, %66 : vector<8x32xf32>
    %68 = arith.mulf %62, %67 : vector<8x32xf32>
    %c13 = arith.constant 13 : index
    %c0_42 = arith.constant 0 : index
    %69 = vector.load %arg16[%c13, %c0_42] : memref<16x32xf32, #tpu.memory_space<vmem>>, vector<3x32xf32>
    %c5_43 = arith.constant 5 : index
    %c0_44 = arith.constant 0 : index
    %70 = vector.load %arg16[%c5_43, %c0_44] : memref<16x32xf32, #tpu.memory_space<vmem>>, vector<3x32xf32>
    tpu.vector_store %arg16[%c5_43, %c0_44], %69 {strides = array<i32>} : memref<16x32xf32, #tpu.memory_space<vmem>>, vector<3x32xf32>,
    %c13_45 = arith.constant 13 : index
    %c0_46 = arith.constant 0 : index
    %71 = vector.load %arg17[%c13_45, %c0_46] : memref<16x32xf32, #tpu.memory_space<vmem>>, vector<3x32xf32>
    %c5_47 = arith.constant 5 : index
    %c0_48 = arith.constant 0 : index
    %72 = vector.load %arg17[%c5_47, %c0_48] : memref<16x32xf32, #tpu.memory_space<vmem>>, vector<3x32xf32>
    tpu.vector_store %arg17[%c5_47, %c0_48], %71 {strides = array<i32>} : memref<16x32xf32, #tpu.memory_space<vmem>>, vector<3x32xf32>,
    %c0_49 = arith.constant 0 : index
    %c0_50 = arith.constant 0 : index
    %73 = vector.load %arg9[%c0_49, %c0_50] : memref<32x33xf32, #tpu.memory_space<vmem>>, vector<32x33xf32>
    %cst_51 = arith.constant dense<0.000000e+00> : vector<8x33xf32>
    %74 = tpu.matmul %38, %73, %cst_51 {dimension_numbers = #tpu.dot_dimension_numbers<[1], [0], [0], [1], [0, 0, 1, 1], [], []>, precision = #tpu.contract_precision<fp32>} : vector<8x32xf32>, vector<32x33xf32>, vector<8x33xf32> -> vector<8x33xf32>
    %75 = vector.extract_strided_slice %74 {offsets = [0, 0], sizes = [8, 1], strides = [1, 1]} : vector<8x33xf32> to vector<8x1xf32>
    %76 = vector.extract_strided_slice %74 {offsets = [0, 1], sizes = [8, 16], strides = [1, 1]} : vector<8x33xf32> to vector<8x16xf32>
    %c0_52 = arith.constant 0 : index
    %c0_53 = arith.constant 0 : index
    %77 = vector.load %arg20[%c0_52, %c0_53] : memref<8x16xf32, #tpu.memory_space<vmem>>, vector<8x16xf32>
    tpu.vector_store %arg20[%c0_52, %c0_53], %76 {strides = array<i32>} : memref<8x16xf32, #tpu.memory_space<vmem>>, vector<8x16xf32>,
    %78 = vector.extract_strided_slice %74 {offsets = [0, 17], sizes = [8, 16], strides = [1, 1]} : vector<8x33xf32> to vector<8x16xf32>
    %c0_54 = arith.constant 0 : index
    %c0_55 = arith.constant 0 : index
    %79 = vector.load %arg21[%c0_54, %c0_55] : memref<8x16xf32, #tpu.memory_space<vmem>>, vector<8x16xf32>
    tpu.vector_store %arg21[%c0_54, %c0_55], %78 {strides = array<i32>} : memref<8x16xf32, #tpu.memory_space<vmem>>, vector<8x16xf32>,
    %cst_56 = arith.constant 0.000000e+00 : f32
    %80 = vector.broadcast %cst_56 : f32 to vector<8x32xf32>
    %c0_57 = arith.constant 0 : index
    %c0_58 = arith.constant 0 : index
    %81 = vector.load %arg10[%c0_57, %c0_58] : memref<1x32xf32, #tpu.memory_space<vmem>>, vector<1x32xf32>
    %82 = vector.broadcast %75 : vector<8x1xf32> to vector<8x32xf32>
    %83 = vector.broadcast %81 : vector<1x32xf32> to vector<8x32xf32>
    %84 = arith.mulf %82, %83 : vector<8x32xf32>
    %85 = arith.addf %80, %84 : vector<8x32xf32>
    %c0_59 = arith.constant 0 : index
    %c0_60 = arith.constant 0 : index
    %86 = vector.load %arg11[%c0_59, %c0_60] : memref<1x32xf32, #tpu.memory_space<vmem>>, vector<1x32xf32>
    %87 = vector.broadcast %86 : vector<1x32xf32> to vector<8x32xf32>
    %88 = arith.addf %85, %87 : vector<8x32xf32>
    %cst_61 = arith.constant 0.000000e+00 : f32
    %89 = vector.broadcast %cst_61 : f32 to vector<8x32xf32>
    %90 = arith.maximumf %88, %89 : vector<8x32xf32>
    %91 = vector.broadcast %cst_61 : f32 to vector<8x32xf32>
    %92 = arith.subf %88, %91 : vector<8x32xf32>
    %93 = arith.cmpf one, %92, %92 : vector<8x32xf32>
    %94 = vector.broadcast %cst_61 : f32 to vector<8x32xf32>
    %95 = arith.addf %88, %94 : vector<8x32xf32>
    %96 = math.absf %92 : vector<8x32xf32>
    %cst_62 = arith.constant 0.000000e+00 : f32
    %97 = vector.broadcast %cst_62 : f32 to vector<8x32xf32>
    %98 = arith.subf %97, %96 : vector<8x32xf32>
    %99 = math.exp %98 : vector<8x32xf32>
    %100 = math.log1p %99 : vector<8x32xf32>
    %101 = arith.addf %90, %100 : vector<8x32xf32>
    %102 = arith.select %93, %95, %101 : vector<8x32xi1>, vector<8x32xf32>
    %c0_63 = arith.constant 0 : index
    %c0_64 = arith.constant 0 : index
    %103 = vector.load %arg18[%c0_63, %c0_64] : memref<8x32xf32, #tpu.memory_space<vmem>>, vector<8x32xf32>
    tpu.vector_store %arg18[%c0_63, %c0_64], %102 {strides = array<i32>} : memref<8x32xf32, #tpu.memory_space<vmem>>, vector<8x32xf32>,
    %c0_65 = arith.constant 0 : index
    %c0_66 = arith.constant 0 : index
    %104 = vector.load %arg19[%c0_65, %c0_66] : memref<8x32xf32, #tpu.memory_space<vmem>>, vector<8x32xf32>
    tpu.vector_store %arg19[%c0_65, %c0_66], %68 {strides = array<i32>} : memref<8x32xf32, #tpu.memory_space<vmem>>, vector<8x32xf32>,
    %c0_67 = arith.constant 0 : index
    %c0_68 = arith.constant 0 : index
    %105 = vector.load %arg12[%c0_67, %c0_68] : memref<16x32xf32, #tpu.memory_space<vmem>>, vector<16x32xf32>
    %c0_69 = arith.constant 0 : index
    %c0_70 = arith.constant 0 : index
    %106 = vector.load %arg13[%c0_69, %c0_70] : memref<1x32xf32, #tpu.memory_space<vmem>>, vector<1x32xf32>
    %c0_71 = arith.constant 0 : index
    %c0_72 = arith.constant 0 : index
    %107 = vector.load %arg15[%c0_71, %c0_72] : memref<16x32xf32, #tpu.memory_space<vmem>>, vector<16x32xf32>
    %c0_i32_73 = arith.constant 0 : i32
    %c8_i32 = arith.constant 8 : i32
    %108 = arith.muli %c0_i32_73, %c8_i32 : i32
    %109 = tpu.assume_multiple %108, 8 : i32
    %110 = arith.index_cast %109 : i32 to index
    %c0_74 = arith.constant 0 : index
    %111 = vector.load %arg18[%110, %c0_74] : memref<8x32xf32, #tpu.memory_space<vmem>>, vector<8x32xf32>
    %112 = arith.index_cast %109 : i32 to index
    %c0_75 = arith.constant 0 : index
    %113 = vector.load %arg19[%112, %c0_75] : memref<8x32xf32, #tpu.memory_space<vmem>>, vector<8x32xf32>
    %114 = arith.mulf %111, %113 : vector<8x32xf32>
    %115 = arith.index_cast %109 : i32 to index
    %c0_76 = arith.constant 0 : index
    %116 = vector.load %arg20[%115, %c0_76] : memref<8x16xf32, #tpu.memory_space<vmem>>, vector<8x16xf32>
    %117 = tpu.transpose %116, [1, 0] : vector<8x16xf32> -> vector<16x8xf32>
    %118 = arith.index_cast %109 : i32 to index
    %c0_77 = arith.constant 0 : index
    %119 = vector.load %arg21[%118, %c0_77] : memref<8x16xf32, #tpu.memory_space<vmem>>, vector<8x16xf32>
    %120 = tpu.transpose %119, [1, 0] : vector<8x16xf32> -> vector<16x8xf32>
    %121 = vector.shape_cast %111 : vector<8x32xf32> to vector<8x1x32xf32>
    %122 = vector.shape_cast %105 : vector<16x32xf32> to vector<1x16x32xf32>
    %123 = vector.broadcast %121 : vector<8x1x32xf32> to vector<8x16x32xf32>
    %124 = vector.broadcast %122 : vector<1x16x32xf32> to vector<8x16x32xf32>
    %125 = arith.mulf %123, %124 : vector<8x16x32xf32>
    %126 = math.exp %125 : vector<8x16x32xf32>
    %127 = vector.extract_strided_slice %126 {offsets = [0, 0, 0], sizes = [1, 16, 32], strides = [1, 1, 1]} : vector<8x16x32xf32> to vector<1x16x32xf32>
    %128 = vector.shape_cast %127 : vector<1x16x32xf32> to vector<16x32xf32>
    %129 = arith.mulf %128, %107 : vector<16x32xf32>
    %130 = vector.extract_strided_slice %117 {offsets = [0, 0], sizes = [16, 1], strides = [1, 1]} : vector<16x8xf32> to vector<16x1xf32>
    %131 = vector.extract_strided_slice %114 {offsets = [0, 0], sizes = [1, 32], strides = [1, 1]} : vector<8x32xf32> to vector<1x32xf32>
    %132 = vector.broadcast %130 : vector<16x1xf32> to vector<16x32xf32>
    %133 = vector.broadcast %131 : vector<1x32xf32> to vector<16x32xf32>
    %134 = arith.mulf %132, %133 : vector<16x32xf32>
    %135 = arith.addf %129, %134 : vector<16x32xf32>
    %136 = vector.extract_strided_slice %120 {offsets = [0, 0], sizes = [16, 1], strides = [1, 1]} : vector<16x8xf32> to vector<16x1xf32>
    %137 = vector.broadcast %136 : vector<16x1xf32> to vector<16x32xf32>
    %138 = arith.mulf %137, %135 : vector<16x32xf32>
    %cst_78 = arith.constant dense<0.000000e+00> : vector<32xf32>
    %139 = vector.multi_reduction <add>, %138, %cst_78 [0] : vector<16x32xf32> to vector<32xf32>
    %140 = vector.shape_cast %139 : vector<32xf32> to vector<1x32xf32>
    %141 = vector.extract_strided_slice %126 {offsets = [1, 0, 0], sizes = [1, 16, 32], strides = [1, 1, 1]} : vector<8x16x32xf32> to vector<1x16x32xf32>
    %142 = vector.shape_cast %141 : vector<1x16x32xf32> to vector<16x32xf32>
    %143 = arith.mulf %142, %135 : vector<16x32xf32>
    %144 = vector.extract_strided_slice %117 {offsets = [0, 1], sizes = [16, 1], strides = [1, 1]} : vector<16x8xf32> to vector<16x1xf32>
    %145 = vector.extract_strided_slice %114 {offsets = [1, 0], sizes = [1, 32], strides = [1, 1]} : vector<8x32xf32> to vector<1x32xf32>
    %146 = vector.broadcast %144 : vector<16x1xf32> to vector<16x32xf32>
    %147 = vector.broadcast %145 : vector<1x32xf32> to vector<16x32xf32>
    %148 = arith.mulf %146, %147 : vector<16x32xf32>
    %149 = arith.addf %143, %148 : vector<16x32xf32>
    %150 = vector.extract_strided_slice %120 {offsets = [0, 1], sizes = [16, 1], strides = [1, 1]} : vector<16x8xf32> to vector<16x1xf32>
    %151 = vector.broadcast %150 : vector<16x1xf32> to vector<16x32xf32>
    %152 = arith.mulf %151, %149 : vector<16x32xf32>
    %cst_79 = arith.constant dense<0.000000e+00> : vector<32xf32>
    %153 = vector.multi_reduction <add>, %152, %cst_79 [0] : vector<16x32xf32> to vector<32xf32>
    %154 = vector.shape_cast %153 : vector<32xf32> to vector<1x32xf32>
    %155 = vector.extract_strided_slice %126 {offsets = [2, 0, 0], sizes = [1, 16, 32], strides = [1, 1, 1]} : vector<8x16x32xf32> to vector<1x16x32xf32>
    %156 = vector.shape_cast %155 : vector<1x16x32xf32> to vector<16x32xf32>
    %157 = arith.mulf %156, %149 : vector<16x32xf32>
    %158 = vector.extract_strided_slice %117 {offsets = [0, 2], sizes = [16, 1], strides = [1, 1]} : vector<16x8xf32> to vector<16x1xf32>
    %159 = vector.extract_strided_slice %114 {offsets = [2, 0], sizes = [1, 32], strides = [1, 1]} : vector<8x32xf32> to vector<1x32xf32>
    %160 = vector.broadcast %158 : vector<16x1xf32> to vector<16x32xf32>
    %161 = vector.broadcast %159 : vector<1x32xf32> to vector<16x32xf32>
    %162 = arith.mulf %160, %161 : vector<16x32xf32>
    %163 = arith.addf %157, %162 : vector<16x32xf32>
    %164 = vector.extract_strided_slice %120 {offsets = [0, 2], sizes = [16, 1], strides = [1, 1]} : vector<16x8xf32> to vector<16x1xf32>
    %165 = vector.broadcast %164 : vector<16x1xf32> to vector<16x32xf32>
    %166 = arith.mulf %165, %163 : vector<16x32xf32>
    %cst_80 = arith.constant dense<0.000000e+00> : vector<32xf32>
    %167 = vector.multi_reduction <add>, %166, %cst_80 [0] : vector<16x32xf32> to vector<32xf32>
    %168 = vector.shape_cast %167 : vector<32xf32> to vector<1x32xf32>
    %169 = vector.extract_strided_slice %126 {offsets = [3, 0, 0], sizes = [1, 16, 32], strides = [1, 1, 1]} : vector<8x16x32xf32> to vector<1x16x32xf32>
    %170 = vector.shape_cast %169 : vector<1x16x32xf32> to vector<16x32xf32>
    %171 = arith.mulf %170, %163 : vector<16x32xf32>
    %172 = vector.extract_strided_slice %117 {offsets = [0, 3], sizes = [16, 1], strides = [1, 1]} : vector<16x8xf32> to vector<16x1xf32>
    %173 = vector.extract_strided_slice %114 {offsets = [3, 0], sizes = [1, 32], strides = [1, 1]} : vector<8x32xf32> to vector<1x32xf32>
    %174 = vector.broadcast %172 : vector<16x1xf32> to vector<16x32xf32>
    %175 = vector.broadcast %173 : vector<1x32xf32> to vector<16x32xf32>
    %176 = arith.mulf %174, %175 : vector<16x32xf32>
    %177 = arith.addf %171, %176 : vector<16x32xf32>
    %178 = vector.extract_strided_slice %120 {offsets = [0, 3], sizes = [16, 1], strides = [1, 1]} : vector<16x8xf32> to vector<16x1xf32>
    %179 = vector.broadcast %178 : vector<16x1xf32> to vector<16x32xf32>
    %180 = arith.mulf %179, %177 : vector<16x32xf32>
    %cst_81 = arith.constant dense<0.000000e+00> : vector<32xf32>
    %181 = vector.multi_reduction <add>, %180, %cst_81 [0] : vector<16x32xf32> to vector<32xf32>
    %182 = vector.shape_cast %181 : vector<32xf32> to vector<1x32xf32>
    %183 = vector.extract_strided_slice %126 {offsets = [4, 0, 0], sizes = [1, 16, 32], strides = [1, 1, 1]} : vector<8x16x32xf32> to vector<1x16x32xf32>
    %184 = vector.shape_cast %183 : vector<1x16x32xf32> to vector<16x32xf32>
    %185 = arith.mulf %184, %177 : vector<16x32xf32>
    %186 = vector.extract_strided_slice %117 {offsets = [0, 4], sizes = [16, 1], strides = [1, 1]} : vector<16x8xf32> to vector<16x1xf32>
    %187 = vector.extract_strided_slice %114 {offsets = [4, 0], sizes = [1, 32], strides = [1, 1]} : vector<8x32xf32> to vector<1x32xf32>
    %188 = vector.broadcast %186 : vector<16x1xf32> to vector<16x32xf32>
    %189 = vector.broadcast %187 : vector<1x32xf32> to vector<16x32xf32>
    %190 = arith.mulf %188, %189 : vector<16x32xf32>
    %191 = arith.addf %185, %190 : vector<16x32xf32>
    %192 = vector.extract_strided_slice %120 {offsets = [0, 4], sizes = [16, 1], strides = [1, 1]} : vector<16x8xf32> to vector<16x1xf32>
    %193 = vector.broadcast %192 : vector<16x1xf32> to vector<16x32xf32>
    %194 = arith.mulf %193, %191 : vector<16x32xf32>
    %cst_82 = arith.constant dense<0.000000e+00> : vector<32xf32>
    %195 = vector.multi_reduction <add>, %194, %cst_82 [0] : vector<16x32xf32> to vector<32xf32>
    %196 = vector.shape_cast %195 : vector<32xf32> to vector<1x32xf32>
    %197 = vector.extract_strided_slice %126 {offsets = [5, 0, 0], sizes = [1, 16, 32], strides = [1, 1, 1]} : vector<8x16x32xf32> to vector<1x16x32xf32>
    %198 = vector.shape_cast %197 : vector<1x16x32xf32> to vector<16x32xf32>
    %199 = arith.mulf %198, %191 : vector<16x32xf32>
    %200 = vector.extract_strided_slice %117 {offsets = [0, 5], sizes = [16, 1], strides = [1, 1]} : vector<16x8xf32> to vector<16x1xf32>
    %201 = vector.extract_strided_slice %114 {offsets = [5, 0], sizes = [1, 32], strides = [1, 1]} : vector<8x32xf32> to vector<1x32xf32>
    %202 = vector.broadcast %200 : vector<16x1xf32> to vector<16x32xf32>
    %203 = vector.broadcast %201 : vector<1x32xf32> to vector<16x32xf32>
    %204 = arith.mulf %202, %203 : vector<16x32xf32>
    %205 = arith.addf %199, %204 : vector<16x32xf32>
    %206 = vector.extract_strided_slice %120 {offsets = [0, 5], sizes = [16, 1], strides = [1, 1]} : vector<16x8xf32> to vector<16x1xf32>
    %207 = vector.broadcast %206 : vector<16x1xf32> to vector<16x32xf32>
    %208 = arith.mulf %207, %205 : vector<16x32xf32>
    %cst_83 = arith.constant dense<0.000000e+00> : vector<32xf32>
    %209 = vector.multi_reduction <add>, %208, %cst_83 [0] : vector<16x32xf32> to vector<32xf32>
    %210 = vector.shape_cast %209 : vector<32xf32> to vector<1x32xf32>
    %211 = vector.extract_strided_slice %126 {offsets = [6, 0, 0], sizes = [1, 16, 32], strides = [1, 1, 1]} : vector<8x16x32xf32> to vector<1x16x32xf32>
    %212 = vector.shape_cast %211 : vector<1x16x32xf32> to vector<16x32xf32>
    %213 = arith.mulf %212, %205 : vector<16x32xf32>
    %214 = vector.extract_strided_slice %117 {offsets = [0, 6], sizes = [16, 1], strides = [1, 1]} : vector<16x8xf32> to vector<16x1xf32>
    %215 = vector.extract_strided_slice %114 {offsets = [6, 0], sizes = [1, 32], strides = [1, 1]} : vector<8x32xf32> to vector<1x32xf32>
    %216 = vector.broadcast %214 : vector<16x1xf32> to vector<16x32xf32>
    %217 = vector.broadcast %215 : vector<1x32xf32> to vector<16x32xf32>
    %218 = arith.mulf %216, %217 : vector<16x32xf32>
    %219 = arith.addf %213, %218 : vector<16x32xf32>
    %220 = vector.extract_strided_slice %120 {offsets = [0, 6], sizes = [16, 1], strides = [1, 1]} : vector<16x8xf32> to vector<16x1xf32>
    %221 = vector.broadcast %220 : vector<16x1xf32> to vector<16x32xf32>
    %222 = arith.mulf %221, %219 : vector<16x32xf32>
    %cst_84 = arith.constant dense<0.000000e+00> : vector<32xf32>
    %223 = vector.multi_reduction <add>, %222, %cst_84 [0] : vector<16x32xf32> to vector<32xf32>
    %224 = vector.shape_cast %223 : vector<32xf32> to vector<1x32xf32>
    %225 = vector.extract_strided_slice %126 {offsets = [7, 0, 0], sizes = [1, 16, 32], strides = [1, 1, 1]} : vector<8x16x32xf32> to vector<1x16x32xf32>
    %226 = vector.shape_cast %225 : vector<1x16x32xf32> to vector<16x32xf32>
    %227 = arith.mulf %226, %219 : vector<16x32xf32>
    %228 = vector.extract_strided_slice %117 {offsets = [0, 7], sizes = [16, 1], strides = [1, 1]} : vector<16x8xf32> to vector<16x1xf32>
    %229 = vector.extract_strided_slice %114 {offsets = [7, 0], sizes = [1, 32], strides = [1, 1]} : vector<8x32xf32> to vector<1x32xf32>
    %230 = vector.broadcast %228 : vector<16x1xf32> to vector<16x32xf32>
    %231 = vector.broadcast %229 : vector<1x32xf32> to vector<16x32xf32>
    %232 = arith.mulf %230, %231 : vector<16x32xf32>
    %233 = arith.addf %227, %232 : vector<16x32xf32>
    %234 = vector.extract_strided_slice %120 {offsets = [0, 7], sizes = [16, 1], strides = [1, 1]} : vector<16x8xf32> to vector<16x1xf32>
    %235 = vector.broadcast %234 : vector<16x1xf32> to vector<16x32xf32>
    %236 = arith.mulf %235, %233 : vector<16x32xf32>
    %cst_85 = arith.constant dense<0.000000e+00> : vector<32xf32>
    %237 = vector.multi_reduction <add>, %236, %cst_85 [0] : vector<16x32xf32> to vector<32xf32>
    %238 = vector.shape_cast %237 : vector<32xf32> to vector<1x32xf32>
    %239 = tpu.concatenate %140, %154, %168, %182, %196, %210, %224, %238 in 0 : vector<1x32xf32>, vector<1x32xf32>, vector<1x32xf32>, vector<1x32xf32>, vector<1x32xf32>, vector<1x32xf32>, vector<1x32xf32>, vector<1x32xf32> -> vector<8x32xf32>
    %c0_86 = arith.constant 0 : index
    %240 = arith.index_cast %109 : i32 to index
    %c0_87 = arith.constant 0 : index
    %241 = vector.load %arg4[%c0_86, %240, %c0_87] : memref<1x8x32xf32, #tpu.memory_space<vmem>>, vector<1x8x32xf32>
    %242 = vector.shape_cast %241 : vector<1x8x32xf32> to vector<8x32xf32>
    %243 = vector.broadcast %106 : vector<1x32xf32> to vector<8x32xf32>
    %244 = arith.mulf %113, %243 : vector<8x32xf32>
    %245 = arith.addf %239, %244 : vector<8x32xf32>
    %246 = arith.negf %242 : vector<8x32xf32>
    %247 = math.exp %246 : vector<8x32xf32>
    %cst_88 = arith.constant 1.000000e+00 : f32
    %248 = vector.broadcast %cst_88 : f32 to vector<8x32xf32>
    %249 = arith.addf %248, %247 : vector<8x32xf32>
    %250 = arith.divf %248, %249 : vector<8x32xf32>
    %251 = arith.mulf %242, %250 : vector<8x32xf32>
    %252 = arith.mulf %245, %251 : vector<8x32xf32>
    %c0_89 = arith.constant 0 : index
    %253 = arith.index_cast %109 : i32 to index
    %c0_90 = arith.constant 0 : index
    %254 = vector.load %arg14[%c0_89, %253, %c0_90] : memref<1x8x32xf32, #tpu.memory_space<vmem>>, vector<1x8x32xf32>
    %255 = vector.shape_cast %254 : vector<1x8x32xf32> to vector<8x32xf32>
    %256 = vector.shape_cast %252 : vector<8x32xf32> to vector<1x8x32xf32>
    tpu.vector_store %arg14[%c0_89, %253, %c0_90], %256 {strides = array<i32>} : memref<1x8x32xf32, #tpu.memory_space<vmem>>, vector<1x8x32xf32>,
    %c1_i32 = arith.constant 1 : i32
    %c0_91 = arith.constant 0 : index
    %c0_92 = arith.constant 0 : index
    %257 = vector.load %arg15[%c0_91, %c0_92] : memref<16x32xf32, #tpu.memory_space<vmem>>, vector<16x32xf32>
    tpu.vector_store %arg15[%c0_91, %c0_92], %233 {strides = array<i32>} : memref<16x32xf32, #tpu.memory_space<vmem>>, vector<16x32xf32>,
    return
  }
  func.func @transform_0(%arg0: i32, %arg1: i32) -> (i32, i32, i32) {
    %c0_i32 = arith.constant 0 : i32
    %c0_i32_0 = arith.constant 0 : i32
    return %arg0, %arg1, %c0_i32 : i32, i32, i32
  }
  func.func @transform_1(%arg0: i32, %arg1: i32) -> (i32, i32, i32) {
    %c0_i32 = arith.constant 0 : i32
    %c0_i32_0 = arith.constant 0 : i32
    return %arg0, %arg1, %c0_i32 : i32, i32, i32
  }
  func.func @transform_2(%arg0: i32, %arg1: i32) -> (i32, i32, i32) {
    %c0_i32 = arith.constant 0 : i32
    %c0_i32_0 = arith.constant 0 : i32
    return %arg0, %arg1, %c0_i32 : i32, i32, i32
  }
  func.func @transform_3(%arg0: i32, %arg1: i32) -> (i32, i32) {
    %c0_i32 = arith.constant 0 : i32
    %c0_i32_0 = arith.constant 0 : i32
    %c0_i32_1 = arith.constant 0 : i32
    return %c0_i32, %c0_i32_0 : i32, i32
  }
  func.func @transform_4(%arg0: i32, %arg1: i32) -> (i32, i32) {
    %c0_i32 = arith.constant 0 : i32
    %c0_i32_0 = arith.constant 0 : i32
    %c0_i32_1 = arith.constant 0 : i32
    return %c0_i32, %c0_i32_0 : i32, i32
  }
  func.func @transform_5(%arg0: i32, %arg1: i32) -> (i32, i32) {
    %c0_i32 = arith.constant 0 : i32
    %c0_i32_0 = arith.constant 0 : i32
    %c0_i32_1 = arith.constant 0 : i32
    return %c0_i32, %c0_i32_0 : i32, i32
  }
  func.func @transform_6(%arg0: i32, %arg1: i32) -> (i32, i32) {
    %c0_i32 = arith.constant 0 : i32
    %c0_i32_0 = arith.constant 0 : i32
    %c0_i32_1 = arith.constant 0 : i32
    return %c0_i32, %c0_i32_0 : i32, i32
  }
  func.func @transform_7(%arg0: i32, %arg1: i32) -> (i32, i32) {
    %c0_i32 = arith.constant 0 : i32
    %c0_i32_0 = arith.constant 0 : i32
    %c0_i32_1 = arith.constant 0 : i32
    return %c0_i32, %c0_i32_0 : i32, i32
  }
  func.func @transform_8(%arg0: i32, %arg1: i32) -> (i32, i32) {
    %c0_i32 = arith.constant 0 : i32
    %c0_i32_0 = arith.constant 0 : i32
    %c0_i32_1 = arith.constant 0 : i32
    return %c0_i32, %c0_i32_0 : i32, i32
  }
  func.func @transform_9(%arg0: i32, %arg1: i32) -> (i32, i32) {
    %c0_i32 = arith.constant 0 : i32
    %c0_i32_0 = arith.constant 0 : i32
    %c0_i32_1 = arith.constant 0 : i32
    return %c0_i32, %c0_i32_0 : i32, i32
  }
  func.func @transform_10(%arg0: i32, %arg1: i32) -> (i32, i32) {
    %c0_i32 = arith.constant 0 : i32
    %c0_i32_0 = arith.constant 0 : i32
    %c0_i32_1 = arith.constant 0 : i32
    return %c0_i32, %c0_i32_0 : i32, i32
  }
  func.func @transform_11(%arg0: i32, %arg1: i32) -> (i32, i32) {
    %c0_i32 = arith.constant 0 : i32
    %c0_i32_0 = arith.constant 0 : i32
    %c0_i32_1 = arith.constant 0 : i32
    return %c0_i32, %c0_i32_0 : i32, i32
  }
  func.func @transform_12(%arg0: i32, %arg1: i32) -> (i32, i32, i32) {
    %c0_i32 = arith.constant 0 : i32
    %c0_i32_0 = arith.constant 0 : i32
    return %arg0, %arg1, %c0_i32 : i32, i32, i32
  }
}

</mosaic_0001>

<llo_original>
// kernel: tpu_custom_call.1
$region0: #{tpu_custom_call.1}
  #allocation0 [shape = 'u32[]', space=smem, size = 0x4, offset = 0x4, fixed_abs, tag = 'smem constant byte address 0x4 - core index']
  #allocation1 [shape = 'u32[72,128]{1,0:T(1,128)}', space=vmem, size = 0x9000, scoped, tag = 'internal scratch']
  #allocation2 [shape = 'f32[16,32]{1,0:T(8,128)}', space=vmem, size = 0x2000, scoped, tag = 'scratch operand']
  #allocation3 [shape = 'f32[16,32]{1,0:T(8,128)}', space=vmem, size = 0x2000, scoped, tag = 'scratch operand']
  #allocation4 [shape = 'f32[16,32]{1,0:T(8,128)}', space=vmem, size = 0x2000, scoped, tag = 'scratch operand']
  #allocation5 [shape = 'f32[8,32]{1,0:T(8,128)}', space=vmem, size = 0x1000, scoped, tag = 'scratch operand']
  #allocation6 [shape = 'f32[8,32]{1,0:T(8,128)}', space=vmem, size = 0x1000, scoped, tag = 'scratch operand']
  #allocation7 [shape = 'f32[8,16]{1,0:T(8,128)}', space=vmem, size = 0x1000, scoped, tag = 'scratch operand']
  #allocation8 [shape = 'f32[8,16]{1,0:T(8,128)}', space=vmem, size = 0x1000, scoped, tag = 'scratch operand']
  %s0 = inlined_call_operand.hbm [shape: f32[2,16,32], index: 0, kind: input, shape index: {}]
  %s1 = inlined_call_operand.hbm [shape: f32[2,16,32], index: 1, kind: input, shape index: {}]
  %s2 = inlined_call_operand.hbm [shape: f32[2,16,32], index: 2, kind: input, shape index: {}]
  %s3 = inlined_call_operand.hbm [shape: f32[4,32], index: 3, kind: input, shape index: {}]
  %s4 = inlined_call_operand.hbm [shape: f32[1,32], index: 4, kind: input, shape index: {}]
  %s5 = inlined_call_operand.vmem [shape: f32[4,32], index: 5, kind: input, shape index: {}]
  %s6 = inlined_call_operand.vmem [shape: f32[1,32], index: 6, kind: input, shape index: {}]
  %s7 = inlined_call_operand.hbm [shape: f32[32,33], index: 7, kind: input, shape index: {}]
  %s8 = inlined_call_operand.vmem [shape: f32[1,32], index: 8, kind: input, shape index: {}]
  %s9 = inlined_call_operand.vmem [shape: f32[1,32], index: 9, kind: input, shape index: {}]
  %s10 = inlined_call_operand.hbm [shape: f32[16,32], index: 10, kind: input, shape index: {}]
  %s11 = inlined_call_operand.vmem [shape: f32[1,32], index: 11, kind: input, shape index: {}]
  %s12 = inlined_call_operand.hbm [shape: f32[2,16,32], index: 12, kind: output, shape index: {}]
  %s13 = sld [smem:[#allocation0]]
  $region113: #{tpu_custom_call.1} parent=0
    _
  %s15 = ssub.s32 1, %s13
  %s16 = scalar_select 0, %s15, %s13
  $region1: #{tpu_custom_call.1} parent=0
    #allocation9 [shape = 'u8[8192]{0}', space=vmem, size = 0x2000, scoped, tag = 'input window, operand 0']
    #allocation10 [shape = 's32[2]{0}', space=sflag, size = 0x8, scoped, tag = 'scoped memory for tpu_custom_call.1']
    #allocation11 [shape = 's32[2]{0}', space=sflag, size = 0x8, scoped, tag = 'scoped memory for tpu_custom_call.1']
    #allocation12 [shape = 'u8[8192]{0}', space=vmem, size = 0x2000, scoped, tag = 'input window, operand 1']
    #allocation13 [shape = 's32[2]{0}', space=sflag, size = 0x8, scoped, tag = 'scoped memory for tpu_custom_call.1']
    #allocation14 [shape = 'u8[8192]{0}', space=vmem, size = 0x2000, scoped, tag = 'input window, operand 2']
    #allocation15 [shape = 'u8[2048]{0}', space=vmem, size = 0x800, scoped, tag = 'input window, operand 3, single buffered']
    #allocation16 [shape = 's32[1]{0}', space=sflag, size = 0x4, scoped, tag = 'scoped memory for tpu_custom_call.1']
    #allocation17 [shape = 'u8[512]{0}', space=vmem, size = 0x400, scoped, tag = 'input window, operand 4, single buffered']
    #allocation18 [shape = 'u8[16384]{0}', space=vmem, size = 0x4000, scoped, tag = 'input window, operand 7, single buffered']
    #allocation19 [shape = 's32[1]{0}', space=sflag, size = 0x4, scoped, tag = 'scoped memory for tpu_custom_call.1']
    #allocation20 [shape = 'u8[8192]{0}', space=vmem, size = 0x2000, scoped, tag = 'input window, operand 10, single buffered']
    #allocation21 [shape = 'u8[8192]{0}', space=vmem, size = 0x2000, scoped, tag = 'output window, operand 0']
    %17 = vsyncpa [#allocation10], 0
    %s18 = scalar_lea.sflag [#allocation10], 1
    %19 = vsyncpa %s18, 0
    %20 = vsyncpa [#allocation13], 0
    %s21 = scalar_lea.sflag [#allocation13], 1
    %22 = vsyncpa %s21, 0
    %23 = vsyncpa [#allocation16], 0
    %24 = vsyncpa [#allocation19], 0
    %25 = vsyncpa [#allocation11], 0
    %s26 = scalar_lea.sflag [#allocation11], 1
    %27 = vsyncpa %s26, 0
    loop: start=0, step=1, limit=6
    $region2: #{tpu_custom_call.1} parent=1 // loop_pre_header
      _
    $region3: #{tpu_custom_call.1} parent=1 // loop_header
      %s29 = sphi 0, %s33
      %p30 = scmp.ge.s32.totalorder %s29, 6
      %s36 = sphi 0, %s48
      %s37 = sphi 0, %s44
      %s38 = sphi 0, %s36
      %s39 = sphi 0, %s37
      %s40 = sphi 0, %s38
      %s41 = sphi 0, %s39
      %s53 = sphi 0, %s55
      %s56 = sphi 0, %s53
      %s57 = sphi 0, %s56
      %s73 = sphi 0, %s57
      %s81 = sphi 0, %s83
      %s84 = sphi 0, %s81
      %s85 = sphi 0, %s84
      %s101 = sphi 0, %s85
      %s109 = sphi 0, %s111
      %s112 = sphi 0, %s109
      %s113 = sphi 0, %s112
      %s129 = sphi 0, %s113
      %s133 = sphi 0, %s133
      %s135 = sphi 0, %s133
      %s136 = sphi 0, %s135
      %s150 = sphi 0, %s136
      %s154 = sphi 0, %s154
      %s156 = sphi 0, %s154
      %s157 = sphi 0, %s156
      %s171 = sphi 0, %s157
      %s175 = sphi 0, %s175
      %s177 = sphi 0, %s175
      %s178 = sphi 0, %s177
      %s192 = sphi 0, %s178
      %s196 = sphi 0, %s196
      %s198 = sphi 0, %s196
      %s199 = sphi 0, %s198
      %s213 = sphi 0, %s199
      %s217 = sphi 0, %s217
      %s219 = sphi 0, %s217
      %s220 = sphi 0, %s219
      %s234 = sphi 0, %s220
      %s238 = sphi 0, %s238
      %s240 = sphi 0, %s238
      %s241 = sphi 0, %s240
      %s255 = sphi 0, %s241
      %s259 = sphi 0, %s259
      %s261 = sphi 0, %s259
      %s262 = sphi 0, %s261
      %s276 = sphi 0, %s262
      %s280 = sphi 0, %s280
      %s282 = sphi 0, %s280
      %s283 = sphi 0, %s282
      %s297 = sphi 0, %s283
      %s301 = sphi 0, %s301
      %s303 = sphi 0, %s301
      %s304 = sphi 0, %s303
      %s318 = sphi 0, %s304
      %s326 = sphi 0, %s328
      %s329 = sphi 0, %s326
      %s330 = sphi 0, %s329
      %s346 = sphi 0, %s330
    $region4: #{tpu_custom_call.1} parent=1 // loop_header_branch
      %32 = sbr.rel (%p30) target = $region8
    $region5: #{tpu_custom_call.1} parent=1 // loop_body
      %s34 = ssub.s32 %s29, 1
      %s35 = ssub.s32 %s29, 2
      %s42 = sadd.s32 1, %s37
      %p43 = scmp.ge.s32.totalorder %s42, 2
      %s44 = scalar_select %p43, 0, %s42
      %s45 = sadd.s32 1, %s36
      %s46 = scalar_select %p43, %s45, %s36
      %p47 = scmp.ge.s32.totalorder %s46, 2
      %s48 = scalar_select %p47, 0, %s46
      %s49 = ssub.s32 %s36, %s48
      %s50 = ssub.s32 %s37, %s44
      %s51 = sor.u32 %s49, %s50
      %p52 = scmp.eq.s32.totalorder %s51, 0
      %s54 = sadd.s32 %s53, 1
      %s55 = scalar_select %p52, %s53, %s54
      %p58 = pneg %p52
      %p59 = scmp.eq.s32.totalorder %s29, 3
      %p60 = por %p58, %p59
      %p61 = scmp.ne.s32.totalorder %s53, %s56
      %p62 = scmp.eq.s32.totalorder %s29, 0
      %p63 = por %p61, %p62
      %p64 = scmp.ne.s32.totalorder %s53, %s56
      %p65 = scmp.eq.s32.totalorder %s34, 3
      %p66 = por %p64, %p65
      %p67 = scmp.ne.s32.totalorder %s56, %s57
      %p68 = scmp.eq.s32.totalorder %s34, 0
      %p69 = por %p67, %p68
      %p70 = scmp.ne.s32.totalorder %s56, %s57
      %p71 = scmp.eq.s32.totalorder %s35, 3
      %p72 = por %p70, %p71
      %p74 = scmp.ne.s32.totalorder %s57, %s73
      %p75 = scmp.eq.s32.totalorder %s35, 0
      %p76 = por %p74, %p75
      %s77 = ssub.s32 %s36, %s48
      %s78 = ssub.s32 %s37, %s44
      %s79 = sor.u32 %s77, %s78
      %p80 = scmp.eq.s32.totalorder %s79, 0
      %s82 = sadd.s32 %s81, 1
      %s83 = scalar_select %p80, %s81, %s82
      %p86 = pneg %p80
      %p87 = scmp.eq.s32.totalorder %s29, 3
      %p88 = por %p86, %p87
      %p89 = scmp.ne.s32.totalorder %s81, %s84
      %p90 = scmp.eq.s32.totalorder %s29, 0
      %p91 = por %p89, %p90
      %p92 = scmp.ne.s32.totalorder %s81, %s84
      %p93 = scmp.eq.s32.totalorder %s34, 3
      %p94 = por %p92, %p93
      %p95 = scmp.ne.s32.totalorder %s84, %s85
      %p96 = scmp.eq.s32.totalorder %s34, 0
      %p97 = por %p95, %p96
      %p98 = scmp.ne.s32.totalorder %s84, %s85
      %p99 = scmp.eq.s32.totalorder %s35, 3
      %p100 = por %p98, %p99
      %p102 = scmp.ne.s32.totalorder %s85, %s101
      %p103 = scmp.eq.s32.totalorder %s35, 0
      %p104 = por %p102, %p103
      %s105 = ssub.s32 %s36, %s48
      %s106 = ssub.s32 %s37, %s44
      %s107 = sor.u32 %s105, %s106
      %p108 = scmp.eq.s32.totalorder %s107, 0
      %s110 = sadd.s32 %s109, 1
      %s111 = scalar_select %p108, %s109, %s110
      %p114 = pneg %p108
      %p115 = scmp.eq.s32.totalorder %s29, 3
      %p116 = por %p114, %p115
      %p117 = scmp.ne.s32.totalorder %s109, %s112
      %p118 = scmp.eq.s32.totalorder %s29, 0
      %p119 = por %p117, %p118
      %p120 = scmp.ne.s32.totalorder %s109, %s112
      %p121 = scmp.eq.s32.totalorder %s34, 3
      %p122 = por %p120, %p121
      %p123 = scmp.ne.s32.totalorder %s112, %s113
      %p124 = scmp.eq.s32.totalorder %s34, 0
      %p125 = por %p123, %p124
      %p126 = scmp.ne.s32.totalorder %s112, %s113
      %p127 = scmp.eq.s32.totalorder %s35, 3
      %p128 = por %p126, %p127
      %p130 = scmp.ne.s32.totalorder %s113, %s129
      %p131 = scmp.eq.s32.totalorder %s35, 0
      %p132 = por %p130, %p131
      %s134 = sadd.s32 %s133, 1
      %p137 = scmp.eq.s32.totalorder %s29, 3
      %p138 = scmp.ne.s32.totalorder %s133, %s135
      %p139 = scmp.eq.s32.totalorder %s29, 0
      %p140 = por %p138, %p139
      %p141 = scmp.ne.s32.totalorder %s133, %s135
      %p142 = scmp.eq.s32.totalorder %s34, 3
      %p143 = por %p141, %p142
      %p144 = scmp.ne.s32.totalorder %s135, %s136
      %p145 = scmp.eq.s32.totalorder %s34, 0
      %p146 = por %p144, %p145
      %p147 = scmp.ne.s32.totalorder %s135, %s136
      %p148 = scmp.eq.s32.totalorder %s35, 3
      %p149 = por %p147, %p148
      %p151 = scmp.ne.s32.totalorder %s136, %s150
      %p152 = scmp.eq.s32.totalorder %s35, 0
      %p153 = por %p151, %p152
      %s155 = sadd.s32 %s154, 1
      %p158 = scmp.eq.s32.totalorder %s29, 3
      %p159 = scmp.ne.s32.totalorder %s154, %s156
      %p160 = scmp.eq.s32.totalorder %s29, 0
      %p161 = por %p159, %p160
      %p162 = scmp.ne.s32.totalorder %s154, %s156
      %p163 = scmp.eq.s32.totalorder %s34, 3
      %p164 = por %p162, %p163
      %p165 = scmp.ne.s32.totalorder %s156, %s157
      %p166 = scmp.eq.s32.totalorder %s34, 0
      %p167 = por %p165, %p166
      %p168 = scmp.ne.s32.totalorder %s156, %s157
      %p169 = scmp.eq.s32.totalorder %s35, 3
      %p170 = por %p168, %p169
      %p172 = scmp.ne.s32.totalorder %s157, %s171
      %p173 = scmp.eq.s32.totalorder %s35, 0
      %p174 = por %p172, %p173
      %s176 = sadd.s32 %s175, 1
      %p179 = scmp.eq.s32.totalorder %s29, 3
      %p180 = scmp.ne.s32.totalorder %s175, %s177
      %p181 = scmp.eq.s32.totalorder %s29, 0
      %p182 = por %p180, %p181
      %p183 = scmp.ne.s32.totalorder %s175, %s177
      %p184 = scmp.eq.s32.totalorder %s34, 3
      %p185 = por %p183, %p184
      %p186 = scmp.ne.s32.totalorder %s177, %s178
      %p187 = scmp.eq.s32.totalorder %s34, 0
      %p188 = por %p186, %p187
      %p189 = scmp.ne.s32.totalorder %s177, %s178
      %p190 = scmp.eq.s32.totalorder %s35, 3
      %p191 = por %p189, %p190
      %p193 = scmp.ne.s32.totalorder %s178, %s192
      %p194 = scmp.eq.s32.totalorder %s35, 0
      %p195 = por %p193, %p194
      %s197 = sadd.s32 %s196, 1
      %p200 = scmp.eq.s32.totalorder %s29, 3
      %p201 = scmp.ne.s32.totalorder %s196, %s198
      %p202 = scmp.eq.s32.totalorder %s29, 0
      %p203 = por %p201, %p202
      %p204 = scmp.ne.s32.totalorder %s196, %s198
      %p205 = scmp.eq.s32.totalorder %s34, 3
      %p206 = por %p204, %p205
      %p207 = scmp.ne.s32.totalorder %s198, %s199
      %p208 = scmp.eq.s32.totalorder %s34, 0
      %p209 = por %p207, %p208
      %p210 = scmp.ne.s32.totalorder %s198, %s199
      %p211 = scmp.eq.s32.totalorder %s35, 3
      %p212 = por %p210, %p211
      %p214 = scmp.ne.s32.totalorder %s199, %s213
      %p215 = scmp.eq.s32.totalorder %s35, 0
      %p216 = por %p214, %p215
      %s218 = sadd.s32 %s217, 1
      %p221 = scmp.eq.s32.totalorder %s29, 3
      %p222 = scmp.ne.s32.totalorder %s217, %s219
      %p223 = scmp.eq.s32.totalorder %s29, 0
      %p224 = por %p222, %p223
      %p225 = scmp.ne.s32.totalorder %s217, %s219
      %p226 = scmp.eq.s32.totalorder %s34, 3
      %p227 = por %p225, %p226
      %p228 = scmp.ne.s32.totalorder %s219, %s220
      %p229 = scmp.eq.s32.totalorder %s34, 0
      %p230 = por %p228, %p229
      %p231 = scmp.ne.s32.totalorder %s219, %s220
      %p232 = scmp.eq.s32.totalorder %s35, 3
      %p233 = por %p231, %p232
      %p235 = scmp.ne.s32.totalorder %s220, %s234
      %p236 = scmp.eq.s32.totalorder %s35, 0
      %p237 = por %p235, %p236
      %s239 = sadd.s32 %s238, 1
      %p242 = scmp.eq.s32.totalorder %s29, 3
      %p243 = scmp.ne.s32.totalorder %s238, %s240
      %p244 = scmp.eq.s32.totalorder %s29, 0
      %p245 = por %p243, %p244
      %p246 = scmp.ne.s32.totalorder %s238, %s240
      %p247 = scmp.eq.s32.totalorder %s34, 3
      %p248 = por %p246, %p247
      %p249 = scmp.ne.s32.totalorder %s240, %s241
      %p250 = scmp.eq.s32.totalorder %s34, 0
      %p251 = por %p249, %p250
      %p252 = scmp.ne.s32.totalorder %s240, %s241
      %p253 = scmp.eq.s32.totalorder %s35, 3
      %p254 = por %p252, %p253
      %p256 = scmp.ne.s32.totalorder %s241, %s255
      %p257 = scmp.eq.s32.totalorder %s35, 0
      %p258 = por %p256, %p257
      %s260 = sadd.s32 %s259, 1
      %p263 = scmp.eq.s32.totalorder %s29, 3
      %p264 = scmp.ne.s32.totalorder %s259, %s261
      %p265 = scmp.eq.s32.totalorder %s29, 0
      %p266 = por %p264, %p265
      %p267 = scmp.ne.s32.totalorder %s259, %s261
      %p268 = scmp.eq.s32.totalorder %s34, 3
      %p269 = por %p267, %p268
      %p270 = scmp.ne.s32.totalorder %s261, %s262
      %p271 = scmp.eq.s32.totalorder %s34, 0
      %p272 = por %p270, %p271
      %p273 = scmp.ne.s32.totalorder %s261, %s262
      %p274 = scmp.eq.s32.totalorder %s35, 3
      %p275 = por %p273, %p274
      %p277 = scmp.ne.s32.totalorder %s262, %s276
      %p278 = scmp.eq.s32.totalorder %s35, 0
      %p279 = por %p277, %p278
      %s281 = sadd.s32 %s280, 1
      %p284 = scmp.eq.s32.totalorder %s29, 3
      %p285 = scmp.ne.s32.totalorder %s280, %s282
      %p286 = scmp.eq.s32.totalorder %s29, 0
      %p287 = por %p285, %p286
      %p288 = scmp.ne.s32.totalorder %s280, %s282
      %p289 = scmp.eq.s32.totalorder %s34, 3
      %p290 = por %p288, %p289
      %p291 = scmp.ne.s32.totalorder %s282, %s283
      %p292 = scmp.eq.s32.totalorder %s34, 0
      %p293 = por %p291, %p292
      %p294 = scmp.ne.s32.totalorder %s282, %s283
      %p295 = scmp.eq.s32.totalorder %s35, 3
      %p296 = por %p294, %p295
      %p298 = scmp.ne.s32.totalorder %s283, %s297
      %p299 = scmp.eq.s32.totalorder %s35, 0
      %p300 = por %p298, %p299
      %s302 = sadd.s32 %s301, 1
      %p305 = scmp.eq.s32.totalorder %s29, 3
      %p306 = scmp.ne.s32.totalorder %s301, %s303
      %p307 = scmp.eq.s32.totalorder %s29, 0
      %p308 = por %p306, %p307
      %p309 = scmp.ne.s32.totalorder %s301, %s303
      %p310 = scmp.eq.s32.totalorder %s34, 3
      %p311 = por %p309, %p310
      %p312 = scmp.ne.s32.totalorder %s303, %s304
      %p313 = scmp.eq.s32.totalorder %s34, 0
      %p314 = por %p312, %p313
      %p315 = scmp.ne.s32.totalorder %s303, %s304
      %p316 = scmp.eq.s32.totalorder %s35, 3
      %p317 = por %p315, %p316
      %p319 = scmp.ne.s32.totalorder %s304, %s318
      %p320 = scmp.eq.s32.totalorder %s35, 0
      %p321 = por %p319, %p320
      %s322 = ssub.s32 %s36, %s48
      %s323 = ssub.s32 %s37, %s44
      %s324 = sor.u32 %s322, %s323
      %p325 = scmp.eq.s32.totalorder %s324, 0
      %s327 = sadd.s32 %s326, 1
      %s328 = scalar_select %p325, %s326, %s327
      %p331 = pneg %p325
      %p332 = scmp.eq.s32.totalorder %s29, 3
      %p333 = por %p331, %p332
      %p334 = scmp.ne.s32.totalorder %s326, %s329
      %p335 = scmp.eq.s32.totalorder %s29, 0
      %p336 = por %p334, %p335
      %p337 = scmp.ne.s32.totalorder %s326, %s329
      %p338 = scmp.eq.s32.totalorder %s34, 3
      %p339 = por %p337, %p338
      %p340 = scmp.ne.s32.totalorder %s329, %s330
      %p341 = scmp.eq.s32.totalorder %s34, 0
      %p342 = por %p340, %p341
      %p343 = scmp.ne.s32.totalorder %s329, %s330
      %p344 = scmp.eq.s32.totalorder %s35, 3
      %p345 = por %p343, %p344
      %p347 = scmp.ne.s32.totalorder %s330, %s346
      %p348 = scmp.eq.s32.totalorder %s35, 0
      %p349 = por %p347, %p348
      %p350 = scmp.le.s32.totalorder 1, %s29
      %p351 = scmp.lt.s32.totalorder %s29, 5
      %p352 = pnand %p350, %p351
      %p353 = pneg %p352
      // Predicated region
      $region9: #{tpu_custom_call.1} parent=5 // pred_check
        _
      $region10: #{tpu_custom_call.1} parent=5 // pred_check_branch
        %355 = sbr.rel (%p352) target = $region12
      $region11: #{tpu_custom_call.1} parent=5 // pred_region
        %s356 = ssub.s32 %s29, 1
        // Predicated region
        $region13: #{tpu_custom_call.1} parent=11 // pred_check
          %p357 = pneg %p146
        $region14: #{tpu_custom_call.1} parent=11 // pred_check_branch
          %359 = sbr.rel (%p357) target = $region16
        $region15: #{tpu_custom_call.1} parent=11 // pred_region
          %361 = vsyncadd [#allocation16], 0
          %s363 = sshll.u32 %s3, 4
          %s364 = int_to_ptr.hbm [resolvable:$true] %s363
          %s365 = sshll.u32 [#allocation15], 4
          %s366 = int_to_ptr.vmem [resolvable:$true] %s365
          %368 = dma.hbm_to_vmem [thread:$0]  %s364, 64, %s366, [#allocation16]
        $region16: #{tpu_custom_call.1} parent=11 // pred_fallthru
          _
        // Predicated region
        $region17: #{tpu_custom_call.1} parent=11 // pred_check
          %p369 = pneg %p167
        $region18: #{tpu_custom_call.1} parent=11 // pred_check_branch
          %371 = sbr.rel (%p369) target = $region20
        $region19: #{tpu_custom_call.1} parent=11 // pred_region
          %373 = vsyncadd [#allocation16], 0
          %s375 = sshll.u32 %s4, 4
          %s376 = int_to_ptr.hbm [resolvable:$true] %s375
          %s377 = sshll.u32 [#allocation17], 4
          %s378 = int_to_ptr.vmem [resolvable:$true] %s377
          %380 = dma.hbm_to_vmem [thread:$0]  %s376, 16, %s378, [#allocation16]
        $region20: #{tpu_custom_call.1} parent=11 // pred_fallthru
          _
        // Predicated region
        $region21: #{tpu_custom_call.1} parent=11 // pred_check
          %p381 = pneg %p188
        $region22: #{tpu_custom_call.1} parent=11 // pred_check_branch
          %383 = sbr.rel (%p381) target = $region24
        $region23: #{tpu_custom_call.1} parent=11 // pred_region
          _
        $region24: #{tpu_custom_call.1} parent=11 // pred_fallthru
          _
        // Predicated region
        $region25: #{tpu_custom_call.1} parent=11 // pred_check
          %p384 = pneg %p209
        $region26: #{tpu_custom_call.1} parent=11 // pred_check_branch
          %386 = sbr.rel (%p384) target = $region28
        $region27: #{tpu_custom_call.1} parent=11 // pred_region
          _
        $region28: #{tpu_custom_call.1} parent=11 // pred_fallthru
          _
        // Predicated region
        $region29: #{tpu_custom_call.1} parent=11 // pred_check
          %p387 = pneg %p230
        $region30: #{tpu_custom_call.1} parent=11 // pred_check_branch
          %389 = sbr.rel (%p387) target = $region32
        $region31: #{tpu_custom_call.1} parent=11 // pred_region
          %391 = vsyncadd [#allocation19], 0
          %s392 = sshll.u32 %s7, 4
          %s393 = int_to_ptr.hbm [resolvable:$true] %s392
          %s394 = sshll.u32 [#allocation18], 4
          %s395 = int_to_ptr.vmem [resolvable:$true] %s394
          %400 = dma.hbm_to_vmem [thread:$0]  %s393, 512, %s395, [#allocation19], 128, 128, 8
        $region32: #{tpu_custom_call.1} parent=11 // pred_fallthru
          _
        // Predicated region
        $region33: #{tpu_custom_call.1} parent=11 // pred_check
          %p401 = pneg %p251
        $region34: #{tpu_custom_call.1} parent=11 // pred_check_branch
          %403 = sbr.rel (%p401) target = $region36
        $region35: #{tpu_custom_call.1} parent=11 // pred_region
          _
        $region36: #{tpu_custom_call.1} parent=11 // pred_fallthru
          _
        // Predicated region
        $region37: #{tpu_custom_call.1} parent=11 // pred_check
          %p404 = pneg %p272
        $region38: #{tpu_custom_call.1} parent=11 // pred_check_branch
          %406 = sbr.rel (%p404) target = $region40
        $region39: #{tpu_custom_call.1} parent=11 // pred_region
          _
        $region40: #{tpu_custom_call.1} parent=11 // pred_fallthru
          _
        // Predicated region
        $region41: #{tpu_custom_call.1} parent=11 // pred_check
          %p407 = pneg %p293
        $region42: #{tpu_custom_call.1} parent=11 // pred_check_branch
          %409 = sbr.rel (%p407) target = $region44
        $region43: #{tpu_custom_call.1} parent=11 // pred_region
          %411 = vsyncadd [#allocation19], 0
          %s412 = sshll.u32 %s10, 4
          %s413 = int_to_ptr.hbm [resolvable:$true] %s412
          %s414 = sshll.u32 [#allocation20], 4
          %s415 = int_to_ptr.vmem [resolvable:$true] %s414
          %420 = dma.hbm_to_vmem [thread:$0]  %s413, 256, %s415, [#allocation19], 128, 128, 8
        $region44: #{tpu_custom_call.1} parent=11 // pred_fallthru
          _
        // Predicated region
        $region45: #{tpu_custom_call.1} parent=11 // pred_check
          %p421 = pneg %p314
        $region46: #{tpu_custom_call.1} parent=11 // pred_check_branch
          %423 = sbr.rel (%p421) target = $region48
        $region47: #{tpu_custom_call.1} parent=11 // pred_region
          _
        $region48: #{tpu_custom_call.1} parent=11 // pred_fallthru
          _
      $region12: #{tpu_custom_call.1} parent=5 // pred_fallthru
        _
      %p424 = scmp.lt.s32.totalorder %s29, 4
      // Predicated region
      $region49: #{tpu_custom_call.1} parent=5 // pred_check
        %p425 = pneg %p424
      $region50: #{tpu_custom_call.1} parent=5 // pred_check_branch
        %427 = sbr.rel (%p425) target = $region52
      $region51: #{tpu_custom_call.1} parent=5 // pred_region
        // Predicated region
        $region53: #{tpu_custom_call.1} parent=51 // pred_check
          %p428 = pneg %p63
        $region54: #{tpu_custom_call.1} parent=51 // pred_check_branch
          %430 = sbr.rel (%p428) target = $region56
        $region55: #{tpu_custom_call.1} parent=51 // pred_region
          %s431 = sand.u32 %s53, 1
          %s432 = scalar_lea.sflag [#allocation10], %s431
          %s433 = sand.u32 %s53, 1
          %s434 = smul.addr %s433, 8
          %s435 = scalar_lea.vmem [#allocation9], %s434
          %437 = vsyncadd %s432, 0
          %s438 = smul.addr %s36, 2
          %s439 = sadd.s32 %s37, %s438
          %s440 = smul.addr %s439, 8
          %s441 = scalar_lea.hbm %s0, %s440
          %s443 = sshll.u32 %s441, 4
          %s444 = int_to_ptr.hbm [resolvable:$true] %s443
          %s445 = sshll.u32 %s435, 4
          %s446 = int_to_ptr.vmem [resolvable:$true] %s445
          %448 = dma.hbm_to_vmem [thread:$0]  %s444, 128, %s446, %s432
        $region56: #{tpu_custom_call.1} parent=51 // pred_fallthru
          _
        // Predicated region
        $region57: #{tpu_custom_call.1} parent=51 // pred_check
          %p449 = pneg %p91
        $region58: #{tpu_custom_call.1} parent=51 // pred_check_branch
          %451 = sbr.rel (%p449) target = $region60
        $region59: #{tpu_custom_call.1} parent=51 // pred_region
          %s452 = sand.u32 %s29, 1
          %s453 = scalar_lea.sflag [#allocation13], %s452
          %s454 = sand.u32 %s81, 1
          %s455 = smul.addr %s454, 8
          %s456 = scalar_lea.vmem [#allocation12], %s455
          %458 = vsyncadd %s453, 0
          %s459 = smul.addr %s36, 2
          %s460 = sadd.s32 %s37, %s459
          %s461 = smul.addr %s460, 8
          %s462 = scalar_lea.hbm %s1, %s461
          %s464 = sshll.u32 %s462, 4
          %s465 = int_to_ptr.hbm [resolvable:$true] %s464
          %s466 = sshll.u32 %s456, 4
          %s467 = int_to_ptr.vmem [resolvable:$true] %s466
          %469 = dma.hbm_to_vmem [thread:$0]  %s465, 128, %s467, %s453
        $region60: #{tpu_custom_call.1} parent=51 // pred_fallthru
          _
        // Predicated region
        $region61: #{tpu_custom_call.1} parent=51 // pred_check
          %p470 = pneg %p119
        $region62: #{tpu_custom_call.1} parent=51 // pred_check_branch
          %472 = sbr.rel (%p470) target = $region64
        $region63: #{tpu_custom_call.1} parent=51 // pred_region
          %s473 = sand.u32 %s29, 1
          %s474 = scalar_lea.sflag [#allocation13], %s473
          %s475 = sand.u32 %s109, 1
          %s476 = smul.addr %s475, 8
          %s477 = scalar_lea.vmem [#allocation14], %s476
          %479 = vsyncadd %s474, 0
          %s480 = smul.addr %s36, 2
          %s481 = sadd.s32 %s37, %s480
          %s482 = smul.addr %s481, 8
          %s483 = scalar_lea.hbm %s2, %s482
          %s485 = sshll.u32 %s483, 4
          %s486 = int_to_ptr.hbm [resolvable:$true] %s485
          %s487 = sshll.u32 %s477, 4
          %s488 = int_to_ptr.vmem [resolvable:$true] %s487
          %490 = dma.hbm_to_vmem [thread:$0]  %s486, 128, %s488, %s474
        $region64: #{tpu_custom_call.1} parent=51 // pred_fallthru
          _
      $region52: #{tpu_custom_call.1} parent=5 // pred_fallthru
        _
      %p491 = scmp.le.s32.totalorder 1, %s29
      %p492 = scmp.lt.s32.totalorder %s29, 5
      %p493 = pnand %p491, %p492
      %p494 = pneg %p493
      // Predicated region
      $region65: #{tpu_custom_call.1} parent=5 // pred_check
        _
      $region66: #{tpu_custom_call.1} parent=5 // pred_check_branch
        %496 = sbr.rel (%p493) target = $region68
      $region67: #{tpu_custom_call.1} parent=5 // pred_region
        %s497 = ssub.s32 %s29, 1
        %s498 = sand.u32 %s56, 1
        %s499 = scalar_lea.sflag [#allocation10], %s498
        %s500 = sand.u32 %s56, 1
        %s501 = smul.addr %s500, 8
        %s502 = scalar_lea.vmem [#allocation9], %s501
        // Predicated region
        $region69: #{tpu_custom_call.1} parent=67 // pred_check
          %p503 = pneg %p69
        $region70: #{tpu_custom_call.1} parent=67 // pred_check_branch
          %505 = sbr.rel (%p503) target = $region72
        $region71: #{tpu_custom_call.1} parent=67 // pred_region
          %507 = dma.done %s499, 128
        $region72: #{tpu_custom_call.1} parent=67 // pred_fallthru
          _
        %s508 = sand.u32 %s34, 1
        %s509 = scalar_lea.sflag [#allocation13], %s508
        %s510 = sand.u32 %s84, 1
        %s511 = smul.addr %s510, 8
        %s512 = scalar_lea.vmem [#allocation12], %s511
        // Predicated region
        $region73: #{tpu_custom_call.1} parent=67 // pred_check
          %p513 = pneg %p97
        $region74: #{tpu_custom_call.1} parent=67 // pred_check_branch
          %515 = sbr.rel (%p513) target = $region76
        $region75: #{tpu_custom_call.1} parent=67 // pred_region
          %517 = dma.done %s509, 128
        $region76: #{tpu_custom_call.1} parent=67 // pred_fallthru
          _
        %s518 = sand.u32 %s34, 1
        %s519 = scalar_lea.sflag [#allocation13], %s518
        %s520 = sand.u32 %s112, 1
        %s521 = smul.addr %s520, 8
        %s522 = scalar_lea.vmem [#allocation14], %s521
        // Predicated region
        $region77: #{tpu_custom_call.1} parent=67 // pred_check
          %p523 = pneg %p125
        $region78: #{tpu_custom_call.1} parent=67 // pred_check_branch
          %525 = sbr.rel (%p523) target = $region80
        $region79: #{tpu_custom_call.1} parent=67 // pred_region
          %527 = dma.done %s519, 128
        $region80: #{tpu_custom_call.1} parent=67 // pred_fallthru
          _
        // Predicated region
        $region81: #{tpu_custom_call.1} parent=67 // pred_check
          %p528 = pneg %p146
        $region82: #{tpu_custom_call.1} parent=67 // pred_check_branch
          %530 = sbr.rel (%p528) target = $region84
        $region83: #{tpu_custom_call.1} parent=67 // pred_region
          %532 = dma.done [#allocation16], 64
        $region84: #{tpu_custom_call.1} parent=67 // pred_fallthru
          _
        // Predicated region
        $region85: #{tpu_custom_call.1} parent=67 // pred_check
          %p533 = pneg %p167
        $region86: #{tpu_custom_call.1} parent=67 // pred_check_branch
          %535 = sbr.rel (%p533) target = $region88
        $region87: #{tpu_custom_call.1} parent=67 // pred_region
          %537 = dma.done [#allocation16], 16
        $region88: #{tpu_custom_call.1} parent=67 // pred_fallthru
          _
        // Predicated region
        $region89: #{tpu_custom_call.1} parent=67 // pred_check
          %p538 = pneg %p230
        $region90: #{tpu_custom_call.1} parent=67 // pred_check_branch
          %540 = sbr.rel (%p538) target = $region92
        $region91: #{tpu_custom_call.1} parent=67 // pred_region
          %542 = dma.done [#allocation19], 512
        $region92: #{tpu_custom_call.1} parent=67 // pred_fallthru
          _
        // Predicated region
        $region93: #{tpu_custom_call.1} parent=67 // pred_check
          %p543 = pneg %p293
        $region94: #{tpu_custom_call.1} parent=67 // pred_check_branch
          %545 = sbr.rel (%p543) target = $region96
        $region95: #{tpu_custom_call.1} parent=67 // pred_region
          %547 = dma.done [#allocation19], 256
        $region96: #{tpu_custom_call.1} parent=67 // pred_fallthru
          _
        %s548 = sand.u32 %s56, 1
        %s549 = scalar_lea.sflag [#allocation10], %s548
        %s550 = sand.u32 %s56, 1
        %s551 = smul.addr %s550, 8
        %s552 = scalar_lea.vmem [#allocation9], %s551
        %p553 = pneg %p69
        %p554 = pneg %p66
        %s555 = sand.u32 %s34, 1
        %s556 = scalar_lea.sflag [#allocation13], %s555
        %s557 = sand.u32 %s84, 1
        %s558 = smul.addr %s557, 8
        %s559 = scalar_lea.vmem [#allocation12], %s558
        %p560 = pneg %p97
        %p561 = pneg %p94
        %s562 = sand.u32 %s34, 1
        %s563 = scalar_lea.sflag [#allocation13], %s562
        %s564 = sand.u32 %s112, 1
        %s565 = smul.addr %s564, 8
        %s566 = scalar_lea.vmem [#allocation14], %s565
        %p567 = pneg %p125
        %p568 = pneg %p122
        %p569 = pneg %p146
        %p570 = pneg %p143
        %p571 = pneg %p167
        %p572 = pneg %p164
        %p573 = pneg %p188
        %p574 = pneg %p185
        %p575 = pneg %p209
        %p576 = pneg %p206
        %p577 = pneg %p230
        %p578 = pneg %p227
        %p579 = pneg %p251
        %p580 = pneg %p248
        %p581 = pneg %p272
        %p582 = pneg %p269
        %p583 = pneg %p293
        %p584 = pneg %p290
        %p585 = pneg %p314
        %p586 = pneg %p311
        %p587 = pneg %p342
        %p588 = pneg %p339
        %s589 = sand.u32 %s329, 1
        %s590 = scalar_lea.sflag [#allocation11], %s589
        %s591 = sand.u32 %s329, 1
        %s592 = smul.addr %s591, 8
        %s593 = scalar_lea.vmem [#allocation21], %s592
        %p594 = scmp.eq.s32.totalorder %s39, 0
        // Predicated region
        $region97: #{tpu_custom_call.1} parent=67 // pred_check
          %p595 = pneg %p594
        $region98: #{tpu_custom_call.1} parent=67 // pred_check_branch
          %597 = sbr.rel (%p595) target = $region100
        $region99: #{tpu_custom_call.1} parent=67 // pred_region
          %vm598 = vcmask 261120
          %599 = vst.msk [vmem:[#allocation2] sm:$0xff] %vm598, 0.0
          %600 = vst.msk [vmem:[#allocation2 + $0x8] sm:$0xff] %vm598, 0.0
          %vm601 = vcmask 256000
          %602 = vst.msk [vmem:[#allocation3 + $0x5] sm:$0x7] %vm601, 0.0
          %603 = vst.msk [vmem:[#allocation4 + $0x5] sm:$0x7] %vm601, 0.0
        $region100: #{tpu_custom_call.1} parent=67 // pred_fallthru
          _
        %v604 = vld [vmem:[%s512] sm:$0xff]
        %vm605 = vcmask 261120
        %606 = vst.msk [vmem:[#allocation3 + $0x8] sm:$0xff] %vm605, %v604
        %v607 = vld [vmem:[%s502] sm:$0xff]
        %608 = vst.msk [vmem:[#allocation4 + $0x8] sm:$0xff] %vm605, %v607
        %v609 = vld [vmem:[#allocation3 + $0x5] sm:$0xff]
        %v610 = vld [vmem:[#allocation15] sm:$0x1]
        %v611 = vperm.slane %v610, 0
        %v612 = vmul.f32 %v609, %v611
        %v613 = vadd.f32 %v612, 0.0
        %v614 = vld [vmem:[#allocation3 + $0x6] sm:$0xff]
        %v615 = vld [vmem:[#allocation15 + $0x1] sm:$0x1]
        %v616 = vperm.slane %v615, 0
        %v617 = vmul.f32 %v614, %v616
        %v618 = vadd.f32 %v613, %v617
        %v619 = vld [vmem:[#allocation3 + $0x7] sm:$0xff]
        %v620 = vld [vmem:[#allocation15 + $0x2] sm:$0x1]
        %v621 = vperm.slane %v620, 0
        %v622 = vmul.f32 %v619, %v621
        %v623 = vadd.f32 %v618, %v622
        %v624 = vld [vmem:[#allocation3 + $0x8] sm:$0xff]
        %v625 = vld [vmem:[#allocation15 + $0x3] sm:$0x1]
        %v626 = vperm.slane %v625, 0
        %v627 = vmul.f32 %v624, %v626
        %v628 = vadd.f32 %v623, %v627
        %v629 = vld [vmem:[#allocation17] sm:$0x1]
        %v631 = vperm.slane %v629, 0
        %v633 = vadd.f32 %v628, %v631
        %v634 = vxor.u32 %v633, 2147483648
        %v635 = vmul.f32 %v634, 1.442695
        %v636 = vpow.pop %v635
        %v637 = vadd.f32 %v636, 1.0
        %v638 = vrcp.pop %v637
        %v639 = vmul.f32 %v637, %v638
        %v640 = vsub.f32 1.0, %v639
        %v641 = vmul.f32 %v638, %v640
        %v642 = vadd.f32 %v638, %v641
        %vm643 = vweird.f32 %v637
        %vm644 = vweird.f32 %v638
        %vm645 = vmor %vm643, %vm644
        %v646 = vsel %vm645, %v638, %v642
        %v647 = vand.u32 2147483647, %v637
        %vm648 = vcmp.eq.f32.partialorder %v647, 8.507059e+37
        %v649 = vand.u32 %v637, 2147483648
        %v650 = vor.u32 1.1754944e-38, %v649
        %v651 = vsel %vm648, %v650, %v646
        %v652 = vmul.f32 1.0, %v651
        %v653 = vmul.f32 %v633, %v652
        %v654 = vld [vmem:[#allocation4 + $0x5] sm:$0xff]
        %v655 = vld [vmem:[%s5] sm:$0x1]
        %v656 = vperm.slane %v655, 0
        %v657 = vmul.f32 %v654, %v656
        %v658 = vadd.f32 %v657, 0.0
        %v659 = vld [vmem:[#allocation4 + $0x6] sm:$0xff]
        %v660 = vld [vmem:[%s5 + $0x1] sm:$0x1]
        %v661 = vperm.slane %v660, 0
        %v662 = vmul.f32 %v659, %v661
        %v663 = vadd.f32 %v658, %v662
        %v664 = vld [vmem:[#allocation4 + $0x7] sm:$0xff]
        %v665 = vld [vmem:[%s5 + $0x2] sm:$0x1]
        %v666 = vperm.slane %v665, 0
        %v667 = vmul.f32 %v664, %v666
        %v668 = vadd.f32 %v663, %v667
        %v669 = vld [vmem:[#allocation4 + $0x8] sm:$0xff]
        %v670 = vld [vmem:[%s5 + $0x3] sm:$0x1]
        %v671 = vperm.slane %v670, 0
        %v672 = vmul.f32 %v669, %v671
        %v673 = vadd.f32 %v668, %v672
        %v674 = vld [vmem:[%s6] sm:$0x1]
        %v676 = vperm.slane %v674, 0
        %v678 = vadd.f32 %v673, %v676
        %v679 = vxor.u32 %v678, 2147483648
        %v680 = vmul.f32 %v679, 1.442695
        %v681 = vpow.pop %v680
        %v682 = vadd.f32 %v681, 1.0
        %v683 = vrcp.pop %v682
        %v684 = vmul.f32 %v682, %v683
        %v685 = vsub.f32 1.0, %v684
        %v686 = vmul.f32 %v683, %v685
        %v687 = vadd.f32 %v683, %v686
        %vm688 = vweird.f32 %v682
        %vm689 = vweird.f32 %v683
        %vm690 = vmor %vm688, %vm689
        %v691 = vsel %vm690, %v683, %v687
        %v692 = vand.u32 2147483647, %v682
        %vm693 = vcmp.eq.f32.partialorder %v692, 8.507059e+37
        %v694 = vand.u32 %v682, 2147483648
        %v695 = vor.u32 1.1754944e-38, %v694
        %v696 = vsel %vm693, %v695, %v691
        %v697 = vmul.f32 1.0, %v696
        %v698 = vmul.f32 %v678, %v697
        %v699 = vld [vmem:[#allocation3 + $0xd] sm:$0x7]
        %vm700 = vcmask 256000
        %701 = vst.msk [vmem:[#allocation3 + $0x5] sm:$0x7] %vm700, %v699
        %v702 = vld [vmem:[#allocation4 + $0xd] sm:$0x7]
        %703 = vst.msk [vmem:[#allocation4 + $0x5] sm:$0x7] %vm700, %v702
        %v704 = vld [vmem:[#allocation18] sm:$0xff]
        %v705 = vld [vmem:[#allocation18 + $0x8] sm:$0xff]
        %v706 = vld [vmem:[#allocation18 + $0x10] sm:$0xff]
        %v707 = vld [vmem:[#allocation18 + $0x18] sm:$0xff]
        %v709 = vsel %vm605, %v653, 0
        %711 = vmatpush.msra.mxu0 0.0
        %712 = vmatpush.msra.mxu0 0.0
        %713 = vmatpush.msra.mxu0 0.0
        %714 = vmatpush.msra.mxu0 0.0
        %715 = vmatpush.msra.mxu0 0.0
        %716 = vmatpush.msra.mxu0 0.0
        %717 = vmatpush.msra.mxu0 0.0
        %718 = vmatpush.msra.mxu0 0.0
        %719 = vmatpush.msra.mxu0 0.0
        %720 = vmatpush.msra.mxu0 0.0
        %721 = vmatpush.msra.mxu0 0.0
        %722 = vmatpush.msra.mxu0 0.0
        %v723 = vand.u32 %v707, 4294901760
        %724 = vmatpush.msra.mxu0 %v723
        %v725 = vand.u32 %v706, 4294901760
        %726 = vmatpush.msra.mxu0 %v725
        %v727 = vand.u32 %v705, 4294901760
        %728 = vmatpush.msra.mxu0 %v727
        %v729 = vand.u32 %v704, 4294901760
        %730 = vmatpush.msra.mxu0 %v729
        %v731 = vand.u32 %v709, 4294901760
        %v732 = vsub.f32 %v709, %v731
        %v733 = vand.u32 %v732, 4294901760
        %v734 = vsub.f32 %v732, %v733
        %v735 = vand.u32 %v734, 4294901760
        %736 = vmatmul.f32.gmra.mxu0 %v735
        %v737 = vpop.f32.mrf.mxu0
        %v738 = vadd.f32 0.0, %v737
        %739 = vdwg.mxu0
        %740 = vmatpush.msra.mxu0 0.0
        %741 = vmatpush.msra.mxu0 0.0
        %742 = vmatpush.msra.mxu0 0.0
        %743 = vmatpush.msra.mxu0 0.0
        %744 = vmatpush.msra.mxu0 0.0
        %745 = vmatpush.msra.mxu0 0.0
        %746 = vmatpush.msra.mxu0 0.0
        %747 = vmatpush.msra.mxu0 0.0
        %748 = vmatpush.msra.mxu0 0.0
        %749 = vmatpush.msra.mxu0 0.0
        %750 = vmatpush.msra.mxu0 0.0
        %751 = vmatpush.msra.mxu0 0.0
        %v752 = vand.u32 %v707, 4294901760
        %v753 = vsub.f32 %v707, %v752
        %v754 = vand.u32 %v753, 4294901760
        %v755 = vsub.f32 %v753, %v754
        %v756 = vand.u32 %v755, 4294901760
        %757 = vmatpush.msra.mxu0 %v756
        %v758 = vand.u32 %v706, 4294901760
        %v759 = vsub.f32 %v706, %v758
        %v760 = vand.u32 %v759, 4294901760
        %v761 = vsub.f32 %v759, %v760
        %v762 = vand.u32 %v761, 4294901760
        %763 = vmatpush.msra.mxu0 %v762
        %v764 = vand.u32 %v705, 4294901760
        %v765 = vsub.f32 %v705, %v764
        %v766 = vand.u32 %v765, 4294901760
        %v767 = vsub.f32 %v765, %v766
        %v768 = vand.u32 %v767, 4294901760
        %769 = vmatpush.msra.mxu0 %v768
        %v770 = vand.u32 %v704, 4294901760
        %v771 = vsub.f32 %v704, %v770
        %v772 = vand.u32 %v771, 4294901760
        %v773 = vsub.f32 %v771, %v772
        %v774 = vand.u32 %v773, 4294901760
        %775 = vmatpush.msra.mxu0 %v774
        %v776 = vand.u32 %v709, 4294901760
        %777 = vmatmul.f32.gmra.mxu0 %v776
        %v778 = vpop.f32.mrf.mxu0
        %v779 = vadd.f32 %v738, %v778
        %780 = vdwg.mxu0
        %781 = vmatpush.msra.mxu0 0.0
        %782 = vmatpush.msra.mxu0 0.0
        %783 = vmatpush.msra.mxu0 0.0
        %784 = vmatpush.msra.mxu0 0.0
        %785 = vmatpush.msra.mxu0 0.0
        %786 = vmatpush.msra.mxu0 0.0
        %787 = vmatpush.msra.mxu0 0.0
        %788 = vmatpush.msra.mxu0 0.0
        %789 = vmatpush.msra.mxu0 0.0
        %790 = vmatpush.msra.mxu0 0.0
        %791 = vmatpush.msra.mxu0 0.0
        %792 = vmatpush.msra.mxu0 0.0
        %v793 = vand.u32 %v707, 4294901760
        %v794 = vsub.f32 %v707, %v793
        %795 = vmatpush.msra.mxu0 %v794
        %v796 = vand.u32 %v706, 4294901760
        %v797 = vsub.f32 %v706, %v796
        %798 = vmatpush.msra.mxu0 %v797
        %v799 = vand.u32 %v705, 4294901760
        %v800 = vsub.f32 %v705, %v799
        %801 = vmatpush.msra.mxu0 %v800
        %v802 = vand.u32 %v704, 4294901760
        %v803 = vsub.f32 %v704, %v802
        %804 = vmatpush.msra.mxu0 %v803
        %v805 = vand.u32 %v709, 4294901760
        %v806 = vsub.f32 %v709, %v805
        %807 = vmatmul.f32.gmra.mxu0 %v806
        %v808 = vpop.f32.mrf.mxu0
        %v809 = vadd.f32 %v779, %v808
        %810 = vdwg.mxu0
        %811 = vmatpush.msra.mxu0 0.0
        %812 = vmatpush.msra.mxu0 0.0
        %813 = vmatpush.msra.mxu0 0.0
        %814 = vmatpush.msra.mxu0 0.0
        %815 = vmatpush.msra.mxu0 0.0
        %816 = vmatpush.msra.mxu0 0.0
        %817 = vmatpush.msra.mxu0 0.0
        %818 = vmatpush.msra.mxu0 0.0
        %819 = vmatpush.msra.mxu0 0.0
        %820 = vmatpush.msra.mxu0 0.0
        %821 = vmatpush.msra.mxu0 0.0
        %822 = vmatpush.msra.mxu0 0.0
        %v823 = vand.u32 %v707, 4294901760
        %824 = vmatpush.msra.mxu0 %v823
        %v825 = vand.u32 %v706, 4294901760
        %826 = vmatpush.msra.mxu0 %v825
        %v827 = vand.u32 %v705, 4294901760
        %828 = vmatpush.msra.mxu0 %v827
        %v829 = vand.u32 %v704, 4294901760
        %830 = vmatpush.msra.mxu0 %v829
        %v831 = vand.u32 %v709, 4294901760
        %v832 = vsub.f32 %v709, %v831
        %v833 = vand.u32 %v832, 4294901760
        %834 = vmatmul.f32.gmra.mxu0 %v833
        %v835 = vpop.f32.mrf.mxu0
        %v836 = vadd.f32 %v809, %v835
        %837 = vdwg.mxu0
        %838 = vmatpush.msra.mxu0 0.0
        %839 = vmatpush.msra.mxu0 0.0
        %840 = vmatpush.msra.mxu0 0.0
        %841 = vmatpush.msra.mxu0 0.0
        %842 = vmatpush.msra.mxu0 0.0
        %843 = vmatpush.msra.mxu0 0.0
        %844 = vmatpush.msra.mxu0 0.0
        %845 = vmatpush.msra.mxu0 0.0
        %846 = vmatpush.msra.mxu0 0.0
        %847 = vmatpush.msra.mxu0 0.0
        %848 = vmatpush.msra.mxu0 0.0
        %849 = vmatpush.msra.mxu0 0.0
        %v850 = vand.u32 %v707, 4294901760
        %v851 = vsub.f32 %v707, %v850
        %v852 = vand.u32 %v851, 4294901760
        %853 = vmatpush.msra.mxu0 %v852
        %v854 = vand.u32 %v706, 4294901760
        %v855 = vsub.f32 %v706, %v854
        %v856 = vand.u32 %v855, 4294901760
        %857 = vmatpush.msra.mxu0 %v856
        %v858 = vand.u32 %v705, 4294901760
        %v859 = vsub.f32 %v705, %v858
        %v860 = vand.u32 %v859, 4294901760
        %861 = vmatpush.msra.mxu0 %v860
        %v862 = vand.u32 %v704, 4294901760
        %v863 = vsub.f32 %v704, %v862
        %v864 = vand.u32 %v863, 4294901760
        %865 = vmatpush.msra.mxu0 %v864
        %v866 = vand.u32 %v709, 4294901760
        %867 = vmatmul.f32.gmra.mxu0 %v866
        %v868 = vpop.f32.mrf.mxu0
        %v869 = vadd.f32 %v836, %v868
        %870 = vdwg.mxu0
        %871 = vmatpush.msra.mxu0 0.0
        %872 = vmatpush.msra.mxu0 0.0
        %873 = vmatpush.msra.mxu0 0.0
        %874 = vmatpush.msra.mxu0 0.0
        %875 = vmatpush.msra.mxu0 0.0
        %876 = vmatpush.msra.mxu0 0.0
        %877 = vmatpush.msra.mxu0 0.0
        %878 = vmatpush.msra.mxu0 0.0
        %879 = vmatpush.msra.mxu0 0.0
        %880 = vmatpush.msra.mxu0 0.0
        %881 = vmatpush.msra.mxu0 0.0
        %882 = vmatpush.msra.mxu0 0.0
        %v883 = vand.u32 %v707, 4294901760
        %884 = vmatpush.msra.mxu0 %v883
        %v885 = vand.u32 %v706, 4294901760
        %886 = vmatpush.msra.mxu0 %v885
        %v887 = vand.u32 %v705, 4294901760
        %888 = vmatpush.msra.mxu0 %v887
        %v889 = vand.u32 %v704, 4294901760
        %890 = vmatpush.msra.mxu0 %v889
        %v891 = vand.u32 %v709, 4294901760
        %892 = vmatmul.f32.gmra.mxu0 %v891
        %v893 = vpop.f32.mrf.mxu0
        %v894 = vadd.f32 %v869, %v893
        %895 = vdwg.mxu0
        %897 = vrot.lane.b32.xlu0 %v894, 127
        %v898 = vpop.permute.xlu0 %897
        %vm900 = vcmask 130048
        %901 = vst.msk [vmem:[#allocation7] sm:$0xff] %vm900, %v898
        %902 = vrot.lane.b32.xlu0 %v894, 111
        %v903 = vpop.permute.xlu0 %902
        %905 = vst.msk [vmem:[#allocation8] sm:$0xff] %vm900, %v903
        %v906 = vld [vmem:[%s8] sm:$0x1]
        %907 = vset.pattern.permute.xlu0 0
        %908 = vperm.xlu0 %907, %v894
        %v909 = vpop.permute.xlu0 %908
        %v912 = vperm.slane %v906, 0
        %v914 = vmul.f32 %v909, %v912
        %v915 = vadd.f32 %v914, 0.0
        %v916 = vld [vmem:[%s9] sm:$0x1]
        %v918 = vperm.slane %v916, 0
        %v920 = vadd.f32 %v915, %v918
        %v921 = vmax.f32 %v920, 0.0
        %vm922 = vcmp.ne.f32.partialorder %v920, %v920
        %v923 = vadd.f32 %v920, 0.0
        %v924 = vand.u32 2147483647, %v920
        %v925 = vsub.f32 0.0, %v924
        %v926 = vmul.f32 %v925, 1.442695
        %v927 = vpow.pop %v926
        %v928 = vadd.f32 %v927, 1.0
        %v929 = vlog2.pop %v928
        %v930 = vmul.f32 %v929, 0.6931472
        %v931 = vmul.f32 -0.5, %v927
        %v932 = vadd.f32 %v931, 1.0
        %v933 = vmul.f32 %v932, %v927
        %v934 = vand.u32 2147483647, %v927
        %vm935 = vcmp.lt.f32.partialorder %v934, 0.0004427343
        %v936 = vsel %vm935, %v933, %v930
        %v937 = vadd.f32 %v921, %v936
        %v938 = vsel %vm922, %v923, %v937
        %939 = vst.msk [vmem:[#allocation5] sm:$0xff] %vm605, %v938
        %940 = vst.msk [vmem:[#allocation6] sm:$0xff] %vm605, %v698
        %v941 = vld [vmem:[#allocation20] sm:$0xff]
        %v942 = vld [vmem:[#allocation20 + $0x8] sm:$0xff]
        %v943 = vld [vmem:[%s11] sm:$0x1]
        %v944 = vld [vmem:[#allocation2] sm:$0xff]
        %v945 = vld [vmem:[#allocation2 + $0x8] sm:$0xff]
        %v946 = vld [vmem:[#allocation5] sm:$0xff]
        %v947 = vld [vmem:[#allocation6] sm:$0xff]
        %v948 = vmul.f32 %v946, %v947
        %v949 = vld [vmem:[#allocation7] sm:$0xff]
        %950 = vxpose.xlu0.b32.start [1/16] %v949, 128
        %951 = vxpose.xlu0.b32.cont [2/16] 0.0, 128
        %952 = vxpose.xlu0.b32.cont [3/16] 0.0, 128
        %953 = vxpose.xlu0.b32.cont [4/16] 0.0, 128
        %954 = vxpose.xlu0.b32.cont [5/16] 0.0, 128
        %955 = vxpose.xlu0.b32.cont [6/16] 0.0, 128
        %956 = vxpose.xlu0.b32.cont [7/16] 0.0, 128
        %957 = vxpose.xlu0.b32.cont [8/16] 0.0, 128
        %958 = vxpose.xlu0.b32.cont [9/16] 0.0, 128
        %959 = vxpose.xlu0.b32.cont [10/16] 0.0, 128
        %960 = vxpose.xlu0.b32.cont [11/16] 0.0, 128
        %961 = vxpose.xlu0.b32.cont [12/16] 0.0, 128
        %962 = vxpose.xlu0.b32.cont [13/16] 0.0, 128
        %963 = vxpose.xlu0.b32.cont [14/16] 0.0, 128
        %964 = vxpose.xlu0.b32.cont [15/16] 0.0, 128
        %965 = vxpose.xlu0.b32.end [16/16] 0.0, 128
        %v966 = vpop.trf.xlu0
        %v967 = vpop.trf.xlu0
        %v968 = vpop.trf.xlu0
        %v969 = vpop.trf.xlu0
        %v970 = vpop.trf.xlu0
        %v971 = vpop.trf.xlu0
        %v972 = vpop.trf.xlu0
        %v973 = vpop.trf.xlu0
        %v974 = vpop.trf.xlu0
        %v975 = vpop.trf.xlu0
        %v976 = vpop.trf.xlu0
        %v977 = vpop.trf.xlu0
        %v978 = vpop.trf.xlu0
        %v979 = vpop.trf.xlu0
        %v980 = vpop.trf.xlu0
        %v981 = vpop.trf.xlu0
        %v982 = vld [vmem:[#allocation8] sm:$0xff]
        %983 = vxpose.xlu0.b32.start [1/16] %v982, 128
        %984 = vxpose.xlu0.b32.cont [2/16] 0.0, 128
        %985 = vxpose.xlu0.b32.cont [3/16] 0.0, 128
        %986 = vxpose.xlu0.b32.cont [4/16] 0.0, 128
        %987 = vxpose.xlu0.b32.cont [5/16] 0.0, 128
        %988 = vxpose.xlu0.b32.cont [6/16] 0.0, 128
        %989 = vxpose.xlu0.b32.cont [7/16] 0.0, 128
        %990 = vxpose.xlu0.b32.cont [8/16] 0.0, 128
        %991 = vxpose.xlu0.b32.cont [9/16] 0.0, 128
        %992 = vxpose.xlu0.b32.cont [10/16] 0.0, 128
        %993 = vxpose.xlu0.b32.cont [11/16] 0.0, 128
        %994 = vxpose.xlu0.b32.cont [12/16] 0.0, 128
        %995 = vxpose.xlu0.b32.cont [13/16] 0.0, 128
        %996 = vxpose.xlu0.b32.cont [14/16] 0.0, 128
        %997 = vxpose.xlu0.b32.cont [15/16] 0.0, 128
        %998 = vxpose.xlu0.b32.end [16/16] 0.0, 128
        %v999 = vpop.trf.xlu0
        %v1000 = vpop.trf.xlu0
        %v1001 = vpop.trf.xlu0
        %v1002 = vpop.trf.xlu0
        %v1003 = vpop.trf.xlu0
        %v1004 = vpop.trf.xlu0
        %v1005 = vpop.trf.xlu0
        %v1006 = vpop.trf.xlu0
        %v1007 = vpop.trf.xlu0
        %v1008 = vpop.trf.xlu0
        %v1009 = vpop.trf.xlu0
        %v1010 = vpop.trf.xlu0
        %v1011 = vpop.trf.xlu0
        %v1012 = vpop.trf.xlu0
        %v1013 = vpop.trf.xlu0
        %v1014 = vpop.trf.xlu0
        %v1016 = vrot.slane %v946, 1
        %v1017 = vrot.slane %v946, 2
        %v1018 = vrot.slane %v946, 3
        %v1019 = vrot.slane %v946, 4
        %v1020 = vrot.slane %v946, 5
        %v1021 = vrot.slane %v946, 6
        %v1022 = vrot.slane %v946, 7
        %v1023 = vperm.slane %v946, 0
        %v1024 = vperm.slane %v1016, 0
        %v1025 = vperm.slane %v1017, 0
        %v1026 = vperm.slane %v1018, 0
        %v1027 = vperm.slane %v1019, 0
        %v1028 = vperm.slane %v1020, 0
        %v1029 = vperm.slane %v1021, 0
        %v1030 = vperm.slane %v1022, 0
        %v1039 = vmul.f32 %v1023, %v941
        %v1040 = vmul.f32 %v1023, %v942
        %v1041 = vmul.f32 %v1024, %v941
        %v1042 = vmul.f32 %v1024, %v942
        %v1043 = vmul.f32 %v1025, %v941
        %v1044 = vmul.f32 %v1025, %v942
        %v1045 = vmul.f32 %v1026, %v941
        %v1046 = vmul.f32 %v1026, %v942
        %v1047 = vmul.f32 %v1027, %v941
        %v1048 = vmul.f32 %v1027, %v942
        %v1049 = vmul.f32 %v1028, %v941
        %v1050 = vmul.f32 %v1028, %v942
        %v1051 = vmul.f32 %v1029, %v941
        %v1052 = vmul.f32 %v1029, %v942
        %v1053 = vmul.f32 %v1030, %v941
        %v1054 = vmul.f32 %v1030, %v942
        %v1055 = vmul.f32 %v1039, 1.442695
        %v1056 = vpow.pop %v1055
        %v1057 = vmul.f32 %v1040, 1.442695
        %v1058 = vpow.pop %v1057
        %v1059 = vmul.f32 %v1041, 1.442695
        %v1060 = vpow.pop %v1059
        %v1061 = vmul.f32 %v1042, 1.442695
        %v1062 = vpow.pop %v1061
        %v1063 = vmul.f32 %v1043, 1.442695
        %v1064 = vpow.pop %v1063
        %v1065 = vmul.f32 %v1044, 1.442695
        %v1066 = vpow.pop %v1065
        %v1067 = vmul.f32 %v1045, 1.442695
        %v1068 = vpow.pop %v1067
        %v1069 = vmul.f32 %v1046, 1.442695
        %v1070 = vpow.pop %v1069
        %v1071 = vmul.f32 %v1047, 1.442695
        %v1072 = vpow.pop %v1071
        %v1073 = vmul.f32 %v1048, 1.442695
        %v1074 = vpow.pop %v1073
        %v1075 = vmul.f32 %v1049, 1.442695
        %v1076 = vpow.pop %v1075
        %v1077 = vmul.f32 %v1050, 1.442695
        %v1078 = vpow.pop %v1077
        %v1079 = vmul.f32 %v1051, 1.442695
        %v1080 = vpow.pop %v1079
        %v1081 = vmul.f32 %v1052, 1.442695
        %v1082 = vpow.pop %v1081
        %v1083 = vmul.f32 %v1053, 1.442695
        %v1084 = vpow.pop %v1083
        %v1085 = vmul.f32 %v1054, 1.442695
        %v1086 = vpow.pop %v1085
        %v1087 = vmul.f32 %v1056, %v944
        %v1088 = vmul.f32 %v1058, %v945
        %1090 = vset.pattern.permute.xlu0 0
        %1091 = vperm.xlu0 %1090, %v966
        %v1092 = vpop.permute.xlu0 %1091
        %1095 = vset.pattern.permute.xlu0 0
        %1096 = vperm.xlu0 %1095, %v967
        %v1097 = vpop.permute.xlu0 %1096
        %v1099 = vperm.slane %v948, 0
        %v1100 = vmul.f32 %v1092, %v1099
        %v1101 = vmul.f32 %v1097, %v1099
        %v1102 = vadd.f32 %v1087, %v1100
        %v1103 = vadd.f32 %v1088, %v1101
        %1105 = vset.pattern.permute.xlu0 0
        %1106 = vperm.xlu0 %1105, %v999
        %v1107 = vpop.permute.xlu0 %1106
        %1110 = vset.pattern.permute.xlu0 0
        %1111 = vperm.xlu0 %1110, %v1000
        %v1112 = vpop.permute.xlu0 %1111
        %v1114 = vmul.f32 %v1107, %v1102
        %v1115 = vmul.f32 %v1112, %v1103
        %v1116 = vsel %vm605, %v1114, 0.0
        %v1117 = vsel %vm605, %v1115, 0.0
        %v1118 = vadd.f32 %v1116, %v1117
        %v1119 = vrot.slane %v1118, 4
        %v1120 = vadd.f32 %v1118, %v1119
        %v1121 = vrot.slane %v1120, 2
        %v1122 = vadd.f32 %v1120, %v1121
        %v1123 = vrot.slane %v1122, 1
        %v1124 = vadd.f32 %v1122, %v1123
        %v1125 = vmul.f32 %v1060, %v1102
        %v1126 = vmul.f32 %v1062, %v1103
        %1127 = vset.pattern.permute.xlu0 1
        %1128 = vperm.xlu0 %1127, %v966
        %v1129 = vpop.permute.xlu0 %1128
        %1131 = vset.pattern.permute.xlu0 1
        %1132 = vperm.xlu0 %1131, %v967
        %v1133 = vpop.permute.xlu0 %1132
        %v1135 = vperm.slane %v948, 1
        %v1136 = vmul.f32 %v1129, %v1135
        %v1137 = vmul.f32 %v1133, %v1135
        %v1138 = vadd.f32 %v1125, %v1136
        %v1139 = vadd.f32 %v1126, %v1137
        %1140 = vset.pattern.permute.xlu0 1
        %1141 = vperm.xlu0 %1140, %v999
        %v1142 = vpop.permute.xlu0 %1141
        %1144 = vset.pattern.permute.xlu0 1
        %1145 = vperm.xlu0 %1144, %v1000
        %v1146 = vpop.permute.xlu0 %1145
        %v1148 = vmul.f32 %v1142, %v1138
        %v1149 = vmul.f32 %v1146, %v1139
        %v1150 = vsel %vm605, %v1148, 0.0
        %v1151 = vsel %vm605, %v1149, 0.0
        %v1152 = vadd.f32 %v1150, %v1151
        %v1153 = vrot.slane %v1152, 4
        %v1154 = vadd.f32 %v1152, %v1153
        %v1155 = vrot.slane %v1154, 2
        %v1156 = vadd.f32 %v1154, %v1155
        %v1157 = vrot.slane %v1156, 1
        %v1158 = vadd.f32 %v1156, %v1157
        %v1159 = vmul.f32 %v1064, %v1138
        %v1160 = vmul.f32 %v1066, %v1139
        %1161 = vset.pattern.permute.xlu0 2
        %1162 = vperm.xlu0 %1161, %v966
        %v1163 = vpop.permute.xlu0 %1162
        %1165 = vset.pattern.permute.xlu0 2
        %1166 = vperm.xlu0 %1165, %v967
        %v1167 = vpop.permute.xlu0 %1166
        %v1169 = vperm.slane %v948, 2
        %v1170 = vmul.f32 %v1163, %v1169
        %v1171 = vmul.f32 %v1167, %v1169
        %v1172 = vadd.f32 %v1159, %v1170
        %v1173 = vadd.f32 %v1160, %v1171
        %1174 = vset.pattern.permute.xlu0 2
        %1175 = vperm.xlu0 %1174, %v999
        %v1176 = vpop.permute.xlu0 %1175
        %1178 = vset.pattern.permute.xlu0 2
        %1179 = vperm.xlu0 %1178, %v1000
        %v1180 = vpop.permute.xlu0 %1179
        %v1182 = vmul.f32 %v1176, %v1172
        %v1183 = vmul.f32 %v1180, %v1173
        %v1184 = vsel %vm605, %v1182, 0.0
        %v1185 = vsel %vm605, %v1183, 0.0
        %v1186 = vadd.f32 %v1184, %v1185
        %v1187 = vrot.slane %v1186, 4
        %v1188 = vadd.f32 %v1186, %v1187
        %v1189 = vrot.slane %v1188, 2
        %v1190 = vadd.f32 %v1188, %v1189
        %v1191 = vrot.slane %v1190, 1
        %v1192 = vadd.f32 %v1190, %v1191
        %v1193 = vmul.f32 %v1068, %v1172
        %v1194 = vmul.f32 %v1070, %v1173
        %1195 = vset.pattern.permute.xlu0 3
        %1196 = vperm.xlu0 %1195, %v966
        %v1197 = vpop.permute.xlu0 %1196
        %1199 = vset.pattern.permute.xlu0 3
        %1200 = vperm.xlu0 %1199, %v967
        %v1201 = vpop.permute.xlu0 %1200
        %v1203 = vperm.slane %v948, 3
        %v1204 = vmul.f32 %v1197, %v1203
        %v1205 = vmul.f32 %v1201, %v1203
        %v1206 = vadd.f32 %v1193, %v1204
        %v1207 = vadd.f32 %v1194, %v1205
        %1208 = vset.pattern.permute.xlu0 3
        %1209 = vperm.xlu0 %1208, %v999
        %v1210 = vpop.permute.xlu0 %1209
        %1212 = vset.pattern.permute.xlu0 3
        %1213 = vperm.xlu0 %1212, %v1000
        %v1214 = vpop.permute.xlu0 %1213
        %v1216 = vmul.f32 %v1210, %v1206
        %v1217 = vmul.f32 %v1214, %v1207
        %v1218 = vsel %vm605, %v1216, 0.0
        %v1219 = vsel %vm605, %v1217, 0.0
        %v1220 = vadd.f32 %v1218, %v1219
        %v1221 = vrot.slane %v1220, 4
        %v1222 = vadd.f32 %v1220, %v1221
        %v1223 = vrot.slane %v1222, 2
        %v1224 = vadd.f32 %v1222, %v1223
        %v1225 = vrot.slane %v1224, 1
        %v1226 = vadd.f32 %v1224, %v1225
        %v1227 = vmul.f32 %v1072, %v1206
        %v1228 = vmul.f32 %v1074, %v1207
        %1229 = vset.pattern.permute.xlu0 4
        %1230 = vperm.xlu0 %1229, %v966
        %v1231 = vpop.permute.xlu0 %1230
        %1233 = vset.pattern.permute.xlu0 4
        %1234 = vperm.xlu0 %1233, %v967
        %v1235 = vpop.permute.xlu0 %1234
        %v1237 = vperm.slane %v948, 4
        %v1238 = vmul.f32 %v1231, %v1237
        %v1239 = vmul.f32 %v1235, %v1237
        %v1240 = vadd.f32 %v1227, %v1238
        %v1241 = vadd.f32 %v1228, %v1239
        %1242 = vset.pattern.permute.xlu0 4
        %1243 = vperm.xlu0 %1242, %v999
        %v1244 = vpop.permute.xlu0 %1243
        %1246 = vset.pattern.permute.xlu0 4
        %1247 = vperm.xlu0 %1246, %v1000
        %v1248 = vpop.permute.xlu0 %1247
        %v1250 = vmul.f32 %v1244, %v1240
        %v1251 = vmul.f32 %v1248, %v1241
        %v1252 = vsel %vm605, %v1250, 0.0
        %v1253 = vsel %vm605, %v1251, 0.0
        %v1254 = vadd.f32 %v1252, %v1253
        %v1255 = vrot.slane %v1254, 4
        %v1256 = vadd.f32 %v1254, %v1255
        %v1257 = vrot.slane %v1256, 2
        %v1258 = vadd.f32 %v1256, %v1257
        %v1259 = vrot.slane %v1258, 1
        %v1260 = vadd.f32 %v1258, %v1259
        %v1261 = vmul.f32 %v1076, %v1240
        %v1262 = vmul.f32 %v1078, %v1241
        %1263 = vset.pattern.permute.xlu0 5
        %1264 = vperm.xlu0 %1263, %v966
        %v1265 = vpop.permute.xlu0 %1264
        %1267 = vset.pattern.permute.xlu0 5
        %1268 = vperm.xlu0 %1267, %v967
        %v1269 = vpop.permute.xlu0 %1268
        %v1271 = vperm.slane %v948, 5
        %v1272 = vmul.f32 %v1265, %v1271
        %v1273 = vmul.f32 %v1269, %v1271
        %v1274 = vadd.f32 %v1261, %v1272
        %v1275 = vadd.f32 %v1262, %v1273
        %1276 = vset.pattern.permute.xlu0 5
        %1277 = vperm.xlu0 %1276, %v999
        %v1278 = vpop.permute.xlu0 %1277
        %1280 = vset.pattern.permute.xlu0 5
        %1281 = vperm.xlu0 %1280, %v1000
        %v1282 = vpop.permute.xlu0 %1281
        %v1284 = vmul.f32 %v1278, %v1274
        %v1285 = vmul.f32 %v1282, %v1275
        %v1286 = vsel %vm605, %v1284, 0.0
        %v1287 = vsel %vm605, %v1285, 0.0
        %v1288 = vadd.f32 %v1286, %v1287
        %v1289 = vrot.slane %v1288, 4
        %v1290 = vadd.f32 %v1288, %v1289
        %v1291 = vrot.slane %v1290, 2
        %v1292 = vadd.f32 %v1290, %v1291
        %v1293 = vrot.slane %v1292, 1
        %v1294 = vadd.f32 %v1292, %v1293
        %v1295 = vmul.f32 %v1080, %v1274
        %v1296 = vmul.f32 %v1082, %v1275
        %1297 = vset.pattern.permute.xlu0 6
        %1298 = vperm.xlu0 %1297, %v966
        %v1299 = vpop.permute.xlu0 %1298
        %1301 = vset.pattern.permute.xlu0 6
        %1302 = vperm.xlu0 %1301, %v967
        %v1303 = vpop.permute.xlu0 %1302
        %v1305 = vperm.slane %v948, 6
        %v1306 = vmul.f32 %v1299, %v1305
        %v1307 = vmul.f32 %v1303, %v1305
        %v1308 = vadd.f32 %v1295, %v1306
        %v1309 = vadd.f32 %v1296, %v1307
        %1310 = vset.pattern.permute.xlu0 6
        %1311 = vperm.xlu0 %1310, %v999
        %v1312 = vpop.permute.xlu0 %1311
        %1314 = vset.pattern.permute.xlu0 6
        %1315 = vperm.xlu0 %1314, %v1000
        %v1316 = vpop.permute.xlu0 %1315
        %v1318 = vmul.f32 %v1312, %v1308
        %v1319 = vmul.f32 %v1316, %v1309
        %v1320 = vsel %vm605, %v1318, 0.0
        %v1321 = vsel %vm605, %v1319, 0.0
        %v1322 = vadd.f32 %v1320, %v1321
        %v1323 = vrot.slane %v1322, 4
        %v1324 = vadd.f32 %v1322, %v1323
        %v1325 = vrot.slane %v1324, 2
        %v1326 = vadd.f32 %v1324, %v1325
        %v1327 = vrot.slane %v1326, 1
        %v1328 = vadd.f32 %v1326, %v1327
        %v1329 = vmul.f32 %v1084, %v1308
        %v1330 = vmul.f32 %v1086, %v1309
        %1331 = vset.pattern.permute.xlu0 7
        %1332 = vperm.xlu0 %1331, %v966
        %v1333 = vpop.permute.xlu0 %1332
        %1335 = vset.pattern.permute.xlu0 7
        %1336 = vperm.xlu0 %1335, %v967
        %v1337 = vpop.permute.xlu0 %1336
        %v1339 = vperm.slane %v948, 7
        %v1340 = vmul.f32 %v1333, %v1339
        %v1341 = vmul.f32 %v1337, %v1339
        %v1342 = vadd.f32 %v1329, %v1340
        %v1343 = vadd.f32 %v1330, %v1341
        %1344 = vset.pattern.permute.xlu0 7
        %1345 = vperm.xlu0 %1344, %v999
        %v1346 = vpop.permute.xlu0 %1345
        %1348 = vset.pattern.permute.xlu0 7
        %1349 = vperm.xlu0 %1348, %v1000
        %v1350 = vpop.permute.xlu0 %1349
        %v1352 = vmul.f32 %v1346, %v1342
        %v1353 = vmul.f32 %v1350, %v1343
        %v1354 = vsel %vm605, %v1352, 0.0
        %v1355 = vsel %vm605, %v1353, 0.0
        %v1356 = vadd.f32 %v1354, %v1355
        %v1357 = vrot.slane %v1356, 4
        %v1358 = vadd.f32 %v1356, %v1357
        %v1359 = vrot.slane %v1358, 2
        %v1360 = vadd.f32 %v1358, %v1359
        %v1361 = vrot.slane %v1360, 1
        %v1362 = vadd.f32 %v1360, %v1361
        %vm1363 = vcmask 1040384
        %v1364 = vsel %vm1363, %v1124, %v1158
        %vm1365 = vcmask 1041408
        %v1366 = vsel %vm1365, %v1364, %v1192
        %vm1367 = vcmask 1042432
        %v1368 = vsel %vm1367, %v1366, %v1226
        %vm1369 = vcmask 1043456
        %v1370 = vsel %vm1369, %v1368, %v1260
        %vm1371 = vcmask 1044480
        %v1372 = vsel %vm1371, %v1370, %v1294
        %vm1373 = vcmask 1045504
        %v1374 = vsel %vm1373, %v1372, %v1328
        %vm1375 = vcmask 1046528
        %v1376 = vsel %vm1375, %v1374, %v1362
        %v1377 = vld [vmem:[%s522] sm:$0xff]
        %v1379 = vperm.slane %v943, 0
        %v1381 = vmul.f32 %v947, %v1379
        %v1382 = vadd.f32 %v1376, %v1381
        %v1383 = vxor.u32 %v1377, 2147483648
        %v1384 = vmul.f32 %v1383, 1.442695
        %v1385 = vpow.pop %v1384
        %v1386 = vadd.f32 %v1385, 1.0
        %v1387 = vrcp.pop %v1386
        %v1388 = vmul.f32 %v1386, %v1387
        %v1389 = vsub.f32 1.0, %v1388
        %v1390 = vmul.f32 %v1387, %v1389
        %v1391 = vadd.f32 %v1387, %v1390
        %vm1392 = vweird.f32 %v1386
        %vm1393 = vweird.f32 %v1387
        %vm1394 = vmor %vm1392, %vm1393
        %v1395 = vsel %vm1394, %v1387, %v1391
        %v1396 = vand.u32 2147483647, %v1386
        %vm1397 = vcmp.eq.f32.partialorder %v1396, 8.507059e+37
        %v1398 = vand.u32 %v1386, 2147483648
        %v1399 = vor.u32 1.1754944e-38, %v1398
        %v1400 = vsel %vm1397, %v1399, %v1395
        %v1401 = vmul.f32 1.0, %v1400
        %v1402 = vmul.f32 %v1377, %v1401
        %v1403 = vmul.f32 %v1382, %v1402
        %1404 = vst.msk [vmem:[%s593] sm:$0xff] %vm605, %v1403
        %1405 = vst.msk [vmem:[#allocation2] sm:$0xff] %vm605, %v1342
        %1406 = vst.msk [vmem:[#allocation2 + $0x8] sm:$0xff] %vm605, %v1343
        %s1407 = sand.u32 %s329, 1
        %s1408 = scalar_lea.sflag [#allocation11], %s1407
        %s1409 = sand.u32 %s329, 1
        %s1410 = smul.addr %s1409, 8
        %s1411 = scalar_lea.vmem [#allocation21], %s1410
        // Predicated region
        $region101: #{tpu_custom_call.1} parent=67 // pred_check
          %p1412 = pneg %p339
        $region102: #{tpu_custom_call.1} parent=67 // pred_check_branch
          %1414 = sbr.rel (%p1412) target = $region104
        $region103: #{tpu_custom_call.1} parent=67 // pred_region
          %1416 = vsyncadd %s1408, 0
          %s1417 = smul.addr %s38, 2
          %s1418 = sadd.s32 %s39, %s1417
          %s1419 = smul.addr %s1418, 8
          %s1420 = scalar_lea.hbm %s12, %s1419
          %s1422 = sshll.u32 %s1411, 4
          %s1423 = int_to_ptr.vmem [resolvable:$true] %s1422
          %s1424 = sshll.u32 %s1420, 4
          %s1425 = int_to_ptr.hbm [resolvable:$true] %s1424
          %1427 = dma.vmem_to_hbm [thread:$0]  %s1423, 128, %s1425, %s1408
        $region104: #{tpu_custom_call.1} parent=67 // pred_fallthru
          _
      $region68: #{tpu_custom_call.1} parent=5 // pred_fallthru
        _
      %p1428 = scmp.le.s32.totalorder 2, %s29
      // Predicated region
      $region105: #{tpu_custom_call.1} parent=5 // pred_check
        %p1429 = pneg %p1428
      $region106: #{tpu_custom_call.1} parent=5 // pred_check_branch
        %1431 = sbr.rel (%p1429) target = $region108
      $region107: #{tpu_custom_call.1} parent=5 // pred_region
        %s1432 = ssub.s32 %s29, 2
        // Predicated region
        $region109: #{tpu_custom_call.1} parent=107 // pred_check
          %p1433 = pneg %p345
        $region110: #{tpu_custom_call.1} parent=107 // pred_check_branch
          %1435 = sbr.rel (%p1433) target = $region112
        $region111: #{tpu_custom_call.1} parent=107 // pred_region
          %s1436 = sand.u32 %s330, 1
          %s1437 = scalar_lea.sflag [#allocation11], %s1436
          %s1438 = sand.u32 %s330, 1
          %s1439 = smul.addr %s1438, 8
          %s1440 = scalar_lea.vmem [#allocation21], %s1439
          %1442 = dma.done %s1437, 128
        $region112: #{tpu_custom_call.1} parent=107 // pred_fallthru
          _
      $region108: #{tpu_custom_call.1} parent=5 // pred_fallthru
        _
    $region6: #{tpu_custom_call.1} parent=1 // loop_footer
      %s33 = sadd.s32 1, %s29
    $region7: #{tpu_custom_call.1} parent=1 // loop_footer_branch
      %28 = sbr.rel target = $region3
    $region8: #{tpu_custom_call.1} parent=1 // loop_exit
      _
    %1443 = vsyncpa [#allocation10], 1
    %s1444 = scalar_lea.sflag [#allocation10], 1
    %1445 = vsyncpa %s1444, 1
    %1446 = vsyncpa [#allocation13], 1
    %s1447 = scalar_lea.sflag [#allocation13], 1
    %1448 = vsyncpa %s1447, 1
    %1449 = vsyncpa [#allocation16], 1
    %1450 = vsyncpa [#allocation19], 1
    %1451 = vsyncpa [#allocation11], 1
    %s1452 = scalar_lea.sflag [#allocation11], 1
    %1453 = vsyncpa %s1452, 1

</llo_original>
